<compile_context>
chip_gen: v7x
topology: tpu7x:2x2x1
jax: 0.10.0
libtpu: 0.0.40
codegen_flags: <defaults>
</compile_context>

<pallas_src>
import functools

import jax
import jax.numpy as jnp
from jax import lax
from jax.experimental import pallas as pl
from jax.experimental.pallas import tpu as pltpu

_LANE_PAD = 128  # output last dim padded to one full lane tile


# ----------------------------------------------------------------------------
# Pallas kernel: chunked pairwise seed->point distances + running bottom-(k+1)
# ----------------------------------------------------------------------------
def _knn_topk_kernel(pcs_ref, seeds_ref, out_ref, *, k1):
    # pcs_ref:   [1, C, TN]   one N-chunk of one batch element (lanes = points)
    # seeds_ref: [1, S, C]    seed coordinates (one seed block)
    # out_ref:   [1, S, 128]  running top-(k1) squared dists while iterating
    #                         over chunks; sqrt'ed on the last chunk.
    #                         Lanes >= k1 hold +inf (sliced off in the wrapper).
    n = pl.program_id(2)
    n_last = pl.num_programs(2) - 1

    C = pcs_ref.shape[1]
    S = seeds_ref.shape[1]
    PAD = out_ref.shape[2]

    pcs = pcs_ref[0]      # [C, TN]
    seeds = seeds_ref[0]  # [S, C]

    # Squared distances for this chunk: d2[s, p] = sum_c (seed[s,c] - pt[p,c])^2
    # Exact diff^2 form (no Gram trick: see header note on cancellation).
    d2 = None
    for c in range(C):  # C is tiny (3); static unroll
        diff = seeds[:, c:c + 1] - pcs[c:c + 1, :]    # [S,1]-[1,TN] -> [S,TN]
        d2 = diff * diff if d2 is None else d2 + diff * diff

    # Candidate set = this chunk's squared distances + running top-(k1) carried
    # in the VMEM-resident output block.  On the first chunk the block holds
    # garbage, so select +inf instead of doing an init store-then-reload.
    prev = out_ref[0]                                            # [S, PAD]
    running = jnp.where(n == 0, jnp.full_like(prev, jnp.inf), prev)
    work = jnp.concatenate([d2, running], axis=-1)               # [S, TN+PAD]

    # Extract the k1 smallest values with a single cross-lane reduction per
    # step; the step minimum is masked wherever it occurs.
    out_iota = lax.broadcasted_iota(jnp.int32, (S, PAD), 1)
    new_top = jnp.full((S, PAD), jnp.inf, dtype=jnp.float32)
    for j in range(k1):  # k1 = k + 1 = 11; static unroll
        m = jnp.min(work, axis=-1, keepdims=True)                # [S, 1]
        new_top = jnp.where(out_iota == j, m, new_top)           # [S, PAD]
        if j + 1 < k1:  # last step needs no masking pass
            work = jnp.where(work == m, jnp.float32(jnp.inf), work)

    # Single lane-dense [S, PAD] store per chunk (no per-column vst.msk).
    @pl.when(n != n_last)
    def _():
        out_ref[0] = new_top                 # keep squared distances

    @pl.when(n == n_last)
    def _():
        out_ref[0] = jnp.sqrt(new_top)       # sqrt only the final k1 values


def _choose_tile_n(n):
    # Largest lane-aligned chunk <= 1024 that divides N.  1024 keeps the
    # [S, TN+128] selection work array (~27 vregs at S=20) comfortably
    # streaming without heavy spills; 2048 (~51 vregs) starts spilling, which
    # hurts most on v5e's single vector-store slot.  VMEM capacity is never
    # the constraint here (all blocks are KB-scale), so the same tile is used
    # on v5e / v6e / v7x.
    for tn in (1024, 512, 256, 128):
        if n % tn == 0:
            return tn
    return n  # fall back to the full dim (allowed by the (8,128) rule)


def knn_topk(pcs_t, seeds_value, k):
    """pcs_t: [B, C, N] f32, seeds_value: [B, S, C] f32 -> [B, S, k+1] f32."""
    B, C, N = pcs_t.shape
    _, S, _ = seeds_value.shape
    k1 = k + 1
    tn = _choose_tile_n(N)
    n_chunks = N // tn

    # v7x has two TensorCores sharing the grid's 'parallel' axes.  With B == 1
    # the batch axis alone would idle one core, so split the seed axis into
    # sublane-aligned blocks of 16 (padding S up with zero-seeds whose rows are
    # sliced off).  With B >= 2 keep the seed axis whole so single-core
    # v5e/v6e never pay for padded rows.
    if B == 1 and S > 16:
        s_blk = 16
        s_pad = ((S + s_blk - 1) // s_blk) * s_blk
        seeds_in = jnp.pad(seeds_value, ((0, 0), (0, s_pad - S), (0, 0)))
    else:
        s_blk = S
        s_pad = S
        seeds_in = seeds_value
    s_blocks = s_pad // s_blk

    out_padded = pl.pallas_call(
        functools.partial(_knn_topk_kernel, k1=k1),
        out_shape=jax.ShapeDtypeStruct((B, s_pad, _LANE_PAD), jnp.float32),
        grid_spec=pltpu.PrefetchScalarGridSpec(
            num_scalar_prefetch=0,
            grid=(B, s_blocks, n_chunks),          # reduction (N) axis last
            in_specs=[
                pl.BlockSpec((1, C, tn), lambda b, s, n: (b, 0, n)),
                pl.BlockSpec((1, s_blk, C), lambda b, s, n: (b, s, 0)),
            ],
            out_specs=pl.BlockSpec((1, s_blk, _LANE_PAD),
                                   lambda b, s, n: (b, s, 0)),
        ),
        compiler_params=pltpu.CompilerParams(
            dimension_semantics=("parallel", "parallel", "arbitrary")),
    )(pcs_t, seeds_in)
    return out_padded[:, :S, :k1]


# ----------------------------------------------------------------------------
# Glue: farthest point sampling (sequential, data-dependent argmax loop)
# ----------------------------------------------------------------------------
# TODO(synk): FPS is an inherently sequential argmax recurrence; it stays in
# plain JAX (lax.fori_loop) rather than inside the Pallas kernel.
def farthest_point_sample(xyz, npoint, key):
    """xyz: [B, N, C] -> centroid indices [B, npoint] (int32)."""
    B, N, C = xyz.shape
    farthest = jax.random.randint(key, (B,), 0, N, dtype=jnp.int32)
    distance = jnp.full((B, N), 1e10, dtype=jnp.float32)
    centroids = jnp.zeros((B, npoint), dtype=jnp.int32)

    def body(i, state):
        centroids, distance, farthest = state
        centroids = centroids.at[:, i].set(farthest)
        idx = jnp.broadcast_to(farthest[:, None, None], (B, 1, C))
        centroid = jnp.take_along_axis(xyz, idx, axis=1)        # [B, 1, C]
        dist = jnp.sum((xyz - centroid) ** 2, axis=-1)          # [B, N]
        distance = jnp.minimum(distance, dist)
        farthest = jnp.argmax(distance, axis=-1).astype(jnp.int32)
        return centroids, distance, farthest

    centroids, _, _ = lax.fori_loop(0, npoint, body,
                                    (centroids, distance, farthest))
    return centroids


# ----------------------------------------------------------------------------
# Full kNNLoss forward
# ----------------------------------------------------------------------------
def knn_loss(pcs, key, k=10, n_seeds=20):
    B, N, C = pcs.shape
    seeds_idx = farthest_point_sample(pcs, n_seeds, key)        # [B, n_seeds]
    gather_idx = jnp.broadcast_to(seeds_idx[:, :, None], (B, n_seeds, C))
    seeds_value = jnp.take_along_axis(pcs, gather_idx, axis=1)  # [B, n_seeds, C]

    pcs_t = jnp.transpose(pcs, (0, 2, 1))                       # [B, C, N]
    top_dist = knn_topk(pcs_t, seeds_value, k)                  # [B, n_seeds, k+1]

    overall_mean = jnp.mean(top_dist[:, :, 1:])
    top_dist = top_dist / overall_mean
    per_seed = jnp.mean(top_dist, axis=2)                       # [B, n_seeds]
    # torch.var default is unbiased (ddof=1) over the flattened tensor;
    # .mean() on the resulting scalar is a no-op.
    return jnp.var(per_seed, ddof=1)


# Pure-JAX reference (no Pallas) for correctness checking.
def knn_loss_ref(pcs, key, k=10, n_seeds=20):
    B, N, C = pcs.shape
    seeds_idx = farthest_point_sample(pcs, n_seeds, key)
    gather_idx = jnp.broadcast_to(seeds_idx[:, :, None], (B, n_seeds, C))
    seeds_value = jnp.take_along_axis(pcs, gather_idx, axis=1)
    diff = pcs[:, :, None, :] - seeds_value[:, None, :, :]      # [B, N, S, C]
    dist_value = jnp.linalg.norm(diff, axis=3)                  # [B, N, S]
    dist_new = jnp.transpose(dist_value, (0, 2, 1))             # [B, S, N]
    top_dist = jnp.sort(dist_new, axis=-1)[:, :, :k + 1]
    overall_mean = jnp.mean(top_dist[:, :, 1:])
    top_dist = top_dist / overall_mean
    per_seed = jnp.mean(top_dist, axis=2)
    return jnp.var(per_seed, ddof=1)


if __name__ == "__main__":
    key = jax.random.PRNGKey(0)
    k_data, k_fps, k_data1, k_fps1 = jax.random.split(key, 4)

    k, n_seeds = 10, 20          # module defaults

    loss_fn = jax.jit(functools.partial(knn_loss, k=k, n_seeds=n_seeds))
    ref_fn = jax.jit(functools.partial(knn_loss_ref, k=k, n_seeds=n_seeds))

    # Case 1: B=2 exercises the batch-parallel axis and the multi-chunk
    # running-top accumulator (N=2048 -> two 1024-point chunks per batch).
    B, N, C = 2, 2048, 3
    pcs = jax.random.normal(k_data, (B, N, C), dtype=jnp.float32)
    loss = jax.block_until_ready(loss_fn(pcs, k_fps))
    ref = jax.block_until_ready(ref_fn(pcs, k_fps))
    assert jnp.isfinite(loss), "loss is not finite"
    assert jnp.allclose(loss, ref, rtol=1e-4, atol=1e-5), (loss, ref)

    # Case 2: B=1 exercises the seed-axis split (two 16-row seed blocks) that
    # keeps both v7x TensorCores busy when the batch axis alone cannot.
    pcs1 = jax.random.normal(k_data1, (1, 1024, 3), dtype=jnp.float32)
    loss1 = jax.block_until_ready(loss_fn(pcs1, k_fps1))
    ref1 = jax.block_until_ready(ref_fn(pcs1, k_fps1))
    assert jnp.isfinite(loss1), "loss1 is not finite"
    assert jnp.allclose(loss1, ref1, rtol=1e-4, atol=1e-5), (loss1, ref1)

    print("KERNEL_OK")
</pallas_src>

<mosaic_0001>
module attributes {stable_mosaic.version = 11 : i64} {
  func.func @_knn_topk_kernel(%arg0: i32, %arg1: i32, %arg2: i32, %arg3: memref<1x3x1024xf32, #tpu.memory_space<vmem>>, %arg4: memref<1x20x3xf32, #tpu.memory_space<vmem>>, %arg5: memref<1x20x128xf32, #tpu.memory_space<vmem>>) attributes {dimension_semantics = [#tpu.dimension_semantics<parallel>, #tpu.dimension_semantics<parallel>, #tpu.dimension_semantics<arbitrary>], iteration_bounds = array<i64: 2, 1, 2>, scalar_prefetch = 0 : i64, scratch_operands = 0 : i64, tpu.core_type = #tpu.core_type<tc>, window_params = [{transform_indices = @transform_0, window_bounds = array<i64: 1, 3, 1024>}, {transform_indices = @transform_1, window_bounds = array<i64: 1, 20, 3>}, {transform_indices = @transform_2, window_bounds = array<i64: 1, 20, 128>}]} {
    %c0 = arith.constant 0 : index
    %c0_0 = arith.constant 0 : index
    %c0_1 = arith.constant 0 : index
    %0 = vector.load %arg3[%c0, %c0_0, %c0_1] : memref<1x3x1024xf32, #tpu.memory_space<vmem>>, vector<1x3x1024xf32>
    %1 = vector.shape_cast %0 : vector<1x3x1024xf32> to vector<3x1024xf32>
    %c0_2 = arith.constant 0 : index
    %c0_3 = arith.constant 0 : index
    %c0_4 = arith.constant 0 : index
    %2 = vector.load %arg4[%c0_2, %c0_3, %c0_4] : memref<1x20x3xf32, #tpu.memory_space<vmem>>, vector<1x20x3xf32>
    %3 = vector.shape_cast %2 : vector<1x20x3xf32> to vector<20x3xf32>
    %4 = vector.extract_strided_slice %3 {offsets = [0, 0], sizes = [20, 1], strides = [1, 1]} : vector<20x3xf32> to vector<20x1xf32>
    %5 = vector.extract_strided_slice %1 {offsets = [0, 0], sizes = [1, 1024], strides = [1, 1]} : vector<3x1024xf32> to vector<1x1024xf32>
    %6 = vector.broadcast %4 : vector<20x1xf32> to vector<20x1024xf32>
    %7 = vector.broadcast %5 : vector<1x1024xf32> to vector<20x1024xf32>
    %8 = arith.subf %6, %7 : vector<20x1024xf32>
    %9 = arith.mulf %8, %8 : vector<20x1024xf32>
    %10 = vector.extract_strided_slice %3 {offsets = [0, 1], sizes = [20, 1], strides = [1, 1]} : vector<20x3xf32> to vector<20x1xf32>
    %11 = vector.extract_strided_slice %1 {offsets = [1, 0], sizes = [1, 1024], strides = [1, 1]} : vector<3x1024xf32> to vector<1x1024xf32>
    %12 = vector.broadcast %10 : vector<20x1xf32> to vector<20x1024xf32>
    %13 = vector.broadcast %11 : vector<1x1024xf32> to vector<20x1024xf32>
    %14 = arith.subf %12, %13 : vector<20x1024xf32>
    %15 = arith.mulf %14, %14 : vector<20x1024xf32>
    %16 = arith.addf %9, %15 : vector<20x1024xf32>
    %17 = vector.extract_strided_slice %3 {offsets = [0, 2], sizes = [20, 1], strides = [1, 1]} : vector<20x3xf32> to vector<20x1xf32>
    %18 = vector.extract_strided_slice %1 {offsets = [2, 0], sizes = [1, 1024], strides = [1, 1]} : vector<3x1024xf32> to vector<1x1024xf32>
    %19 = vector.broadcast %17 : vector<20x1xf32> to vector<20x1024xf32>
    %20 = vector.broadcast %18 : vector<1x1024xf32> to vector<20x1024xf32>
    %21 = arith.subf %19, %20 : vector<20x1024xf32>
    %22 = arith.mulf %21, %21 : vector<20x1024xf32>
    %23 = arith.addf %16, %22 : vector<20x1024xf32>
    %c0_5 = arith.constant 0 : index
    %c0_6 = arith.constant 0 : index
    %c0_7 = arith.constant 0 : index
    %24 = vector.load %arg5[%c0_5, %c0_6, %c0_7] : memref<1x20x128xf32, #tpu.memory_space<vmem>>, vector<1x20x128xf32>
    %25 = vector.shape_cast %24 : vector<1x20x128xf32> to vector<20x128xf32>
    %c0_i32 = arith.constant 0 : i32
    %26 = arith.cmpi eq, %arg2, %c0_i32 : i32
    %cst = arith.constant 0x7F800000 : f32
    %27 = vector.broadcast %cst : f32 to vector<20x128xf32>
    %28 = arith.select %26, %27, %25 : vector<20x128xf32>
    %29 = tpu.concatenate %23, %28 in 1 : vector<20x1024xf32>, vector<20x128xf32> -> vector<20x1152xf32>
    %30 = tpu.iota {dimensions = array<i32: 1>} : vector<20x128xi32>
    %cst_8 = arith.constant 0x7F800000 : f32
    %31 = vector.broadcast %cst_8 : f32 to vector<20x128xf32>
    %cst_9 = arith.constant dense<0x7F800000> : vector<20xf32>
    %32 = vector.multi_reduction <minimumf>, %29, %cst_9 [1] : vector<20x1152xf32> to vector<20xf32>
    %33 = vector.shape_cast %32 : vector<20xf32> to vector<20x1xf32>
    %c0_i32_10 = arith.constant 0 : i32
    %34 = vector.broadcast %c0_i32_10 : i32 to vector<20x128xi32>
    %35 = arith.cmpi eq, %30, %34 : vector<20x128xi32>
    %36 = vector.shape_cast %33 : vector<20x1xf32> to vector<20x1xf32>
    %37 = vector.broadcast %36 : vector<20x1xf32> to vector<20x128xf32>
    %38 = arith.select %35, %37, %31 : vector<20x128xi1>, vector<20x128xf32>
    %39 = vector.broadcast %33 : vector<20x1xf32> to vector<20x1152xf32>
    %40 = arith.cmpf oeq, %29, %39 : vector<20x1152xf32>
    %cst_11 = arith.constant 0x7F800000 : f32
    %41 = vector.broadcast %cst_11 : f32 to vector<20x1152xf32>
    %42 = arith.select %40, %41, %29 : vector<20x1152xi1>, vector<20x1152xf32>
    %cst_12 = arith.constant dense<0x7F800000> : vector<20xf32>
    %43 = vector.multi_reduction <minimumf>, %42, %cst_12 [1] : vector<20x1152xf32> to vector<20xf32>
    %44 = vector.shape_cast %43 : vector<20xf32> to vector<20x1xf32>
    %c1_i32 = arith.constant 1 : i32
    %45 = vector.broadcast %c1_i32 : i32 to vector<20x128xi32>
    %46 = arith.cmpi eq, %30, %45 : vector<20x128xi32>
    %47 = vector.shape_cast %44 : vector<20x1xf32> to vector<20x1xf32>
    %48 = vector.broadcast %47 : vector<20x1xf32> to vector<20x128xf32>
    %49 = arith.select %46, %48, %38 : vector<20x128xi1>, vector<20x128xf32>
    %50 = vector.broadcast %44 : vector<20x1xf32> to vector<20x1152xf32>
    %51 = arith.cmpf oeq, %42, %50 : vector<20x1152xf32>
    %cst_13 = arith.constant 0x7F800000 : f32
    %52 = vector.broadcast %cst_13 : f32 to vector<20x1152xf32>
    %53 = arith.select %51, %52, %42 : vector<20x1152xi1>, vector<20x1152xf32>
    %cst_14 = arith.constant dense<0x7F800000> : vector<20xf32>
    %54 = vector.multi_reduction <minimumf>, %53, %cst_14 [1] : vector<20x1152xf32> to vector<20xf32>
    %55 = vector.shape_cast %54 : vector<20xf32> to vector<20x1xf32>
    %c2_i32 = arith.constant 2 : i32
    %56 = vector.broadcast %c2_i32 : i32 to vector<20x128xi32>
    %57 = arith.cmpi eq, %30, %56 : vector<20x128xi32>
    %58 = vector.shape_cast %55 : vector<20x1xf32> to vector<20x1xf32>
    %59 = vector.broadcast %58 : vector<20x1xf32> to vector<20x128xf32>
    %60 = arith.select %57, %59, %49 : vector<20x128xi1>, vector<20x128xf32>
    %61 = vector.broadcast %55 : vector<20x1xf32> to vector<20x1152xf32>
    %62 = arith.cmpf oeq, %53, %61 : vector<20x1152xf32>
    %cst_15 = arith.constant 0x7F800000 : f32
    %63 = vector.broadcast %cst_15 : f32 to vector<20x1152xf32>
    %64 = arith.select %62, %63, %53 : vector<20x1152xi1>, vector<20x1152xf32>
    %cst_16 = arith.constant dense<0x7F800000> : vector<20xf32>
    %65 = vector.multi_reduction <minimumf>, %64, %cst_16 [1] : vector<20x1152xf32> to vector<20xf32>
    %66 = vector.shape_cast %65 : vector<20xf32> to vector<20x1xf32>
    %c3_i32 = arith.constant 3 : i32
    %67 = vector.broadcast %c3_i32 : i32 to vector<20x128xi32>
    %68 = arith.cmpi eq, %30, %67 : vector<20x128xi32>
    %69 = vector.shape_cast %66 : vector<20x1xf32> to vector<20x1xf32>
    %70 = vector.broadcast %69 : vector<20x1xf32> to vector<20x128xf32>
    %71 = arith.select %68, %70, %60 : vector<20x128xi1>, vector<20x128xf32>
    %72 = vector.broadcast %66 : vector<20x1xf32> to vector<20x1152xf32>
    %73 = arith.cmpf oeq, %64, %72 : vector<20x1152xf32>
    %cst_17 = arith.constant 0x7F800000 : f32
    %74 = vector.broadcast %cst_17 : f32 to vector<20x1152xf32>
    %75 = arith.select %73, %74, %64 : vector<20x1152xi1>, vector<20x1152xf32>
    %cst_18 = arith.constant dense<0x7F800000> : vector<20xf32>
    %76 = vector.multi_reduction <minimumf>, %75, %cst_18 [1] : vector<20x1152xf32> to vector<20xf32>
    %77 = vector.shape_cast %76 : vector<20xf32> to vector<20x1xf32>
    %c4_i32 = arith.constant 4 : i32
    %78 = vector.broadcast %c4_i32 : i32 to vector<20x128xi32>
    %79 = arith.cmpi eq, %30, %78 : vector<20x128xi32>
    %80 = vector.shape_cast %77 : vector<20x1xf32> to vector<20x1xf32>
    %81 = vector.broadcast %80 : vector<20x1xf32> to vector<20x128xf32>
    %82 = arith.select %79, %81, %71 : vector<20x128xi1>, vector<20x128xf32>
    %83 = vector.broadcast %77 : vector<20x1xf32> to vector<20x1152xf32>
    %84 = arith.cmpf oeq, %75, %83 : vector<20x1152xf32>
    %cst_19 = arith.constant 0x7F800000 : f32
    %85 = vector.broadcast %cst_19 : f32 to vector<20x1152xf32>
    %86 = arith.select %84, %85, %75 : vector<20x1152xi1>, vector<20x1152xf32>
    %cst_20 = arith.constant dense<0x7F800000> : vector<20xf32>
    %87 = vector.multi_reduction <minimumf>, %86, %cst_20 [1] : vector<20x1152xf32> to vector<20xf32>
    %88 = vector.shape_cast %87 : vector<20xf32> to vector<20x1xf32>
    %c5_i32 = arith.constant 5 : i32
    %89 = vector.broadcast %c5_i32 : i32 to vector<20x128xi32>
    %90 = arith.cmpi eq, %30, %89 : vector<20x128xi32>
    %91 = vector.shape_cast %88 : vector<20x1xf32> to vector<20x1xf32>
    %92 = vector.broadcast %91 : vector<20x1xf32> to vector<20x128xf32>
    %93 = arith.select %90, %92, %82 : vector<20x128xi1>, vector<20x128xf32>
    %94 = vector.broadcast %88 : vector<20x1xf32> to vector<20x1152xf32>
    %95 = arith.cmpf oeq, %86, %94 : vector<20x1152xf32>
    %cst_21 = arith.constant 0x7F800000 : f32
    %96 = vector.broadcast %cst_21 : f32 to vector<20x1152xf32>
    %97 = arith.select %95, %96, %86 : vector<20x1152xi1>, vector<20x1152xf32>
    %cst_22 = arith.constant dense<0x7F800000> : vector<20xf32>
    %98 = vector.multi_reduction <minimumf>, %97, %cst_22 [1] : vector<20x1152xf32> to vector<20xf32>
    %99 = vector.shape_cast %98 : vector<20xf32> to vector<20x1xf32>
    %c6_i32 = arith.constant 6 : i32
    %100 = vector.broadcast %c6_i32 : i32 to vector<20x128xi32>
    %101 = arith.cmpi eq, %30, %100 : vector<20x128xi32>
    %102 = vector.shape_cast %99 : vector<20x1xf32> to vector<20x1xf32>
    %103 = vector.broadcast %102 : vector<20x1xf32> to vector<20x128xf32>
    %104 = arith.select %101, %103, %93 : vector<20x128xi1>, vector<20x128xf32>
    %105 = vector.broadcast %99 : vector<20x1xf32> to vector<20x1152xf32>
    %106 = arith.cmpf oeq, %97, %105 : vector<20x1152xf32>
    %cst_23 = arith.constant 0x7F800000 : f32
    %107 = vector.broadcast %cst_23 : f32 to vector<20x1152xf32>
    %108 = arith.select %106, %107, %97 : vector<20x1152xi1>, vector<20x1152xf32>
    %cst_24 = arith.constant dense<0x7F800000> : vector<20xf32>
    %109 = vector.multi_reduction <minimumf>, %108, %cst_24 [1] : vector<20x1152xf32> to vector<20xf32>
    %110 = vector.shape_cast %109 : vector<20xf32> to vector<20x1xf32>
    %c7_i32 = arith.constant 7 : i32
    %111 = vector.broadcast %c7_i32 : i32 to vector<20x128xi32>
    %112 = arith.cmpi eq, %30, %111 : vector<20x128xi32>
    %113 = vector.shape_cast %110 : vector<20x1xf32> to vector<20x1xf32>
    %114 = vector.broadcast %113 : vector<20x1xf32> to vector<20x128xf32>
    %115 = arith.select %112, %114, %104 : vector<20x128xi1>, vector<20x128xf32>
    %116 = vector.broadcast %110 : vector<20x1xf32> to vector<20x1152xf32>
    %117 = arith.cmpf oeq, %108, %116 : vector<20x1152xf32>
    %cst_25 = arith.constant 0x7F800000 : f32
    %118 = vector.broadcast %cst_25 : f32 to vector<20x1152xf32>
    %119 = arith.select %117, %118, %108 : vector<20x1152xi1>, vector<20x1152xf32>
    %cst_26 = arith.constant dense<0x7F800000> : vector<20xf32>
    %120 = vector.multi_reduction <minimumf>, %119, %cst_26 [1] : vector<20x1152xf32> to vector<20xf32>
    %121 = vector.shape_cast %120 : vector<20xf32> to vector<20x1xf32>
    %c8_i32 = arith.constant 8 : i32
    %122 = vector.broadcast %c8_i32 : i32 to vector<20x128xi32>
    %123 = arith.cmpi eq, %30, %122 : vector<20x128xi32>
    %124 = vector.shape_cast %121 : vector<20x1xf32> to vector<20x1xf32>
    %125 = vector.broadcast %124 : vector<20x1xf32> to vector<20x128xf32>
    %126 = arith.select %123, %125, %115 : vector<20x128xi1>, vector<20x128xf32>
    %127 = vector.broadcast %121 : vector<20x1xf32> to vector<20x1152xf32>
    %128 = arith.cmpf oeq, %119, %127 : vector<20x1152xf32>
    %cst_27 = arith.constant 0x7F800000 : f32
    %129 = vector.broadcast %cst_27 : f32 to vector<20x1152xf32>
    %130 = arith.select %128, %129, %119 : vector<20x1152xi1>, vector<20x1152xf32>
    %cst_28 = arith.constant dense<0x7F800000> : vector<20xf32>
    %131 = vector.multi_reduction <minimumf>, %130, %cst_28 [1] : vector<20x1152xf32> to vector<20xf32>
    %132 = vector.shape_cast %131 : vector<20xf32> to vector<20x1xf32>
    %c9_i32 = arith.constant 9 : i32
    %133 = vector.broadcast %c9_i32 : i32 to vector<20x128xi32>
    %134 = arith.cmpi eq, %30, %133 : vector<20x128xi32>
    %135 = vector.shape_cast %132 : vector<20x1xf32> to vector<20x1xf32>
    %136 = vector.broadcast %135 : vector<20x1xf32> to vector<20x128xf32>
    %137 = arith.select %134, %136, %126 : vector<20x128xi1>, vector<20x128xf32>
    %138 = vector.broadcast %132 : vector<20x1xf32> to vector<20x1152xf32>
    %139 = arith.cmpf oeq, %130, %138 : vector<20x1152xf32>
    %cst_29 = arith.constant 0x7F800000 : f32
    %140 = vector.broadcast %cst_29 : f32 to vector<20x1152xf32>
    %141 = arith.select %139, %140, %130 : vector<20x1152xi1>, vector<20x1152xf32>
    %cst_30 = arith.constant dense<0x7F800000> : vector<20xf32>
    %142 = vector.multi_reduction <minimumf>, %141, %cst_30 [1] : vector<20x1152xf32> to vector<20xf32>
    %143 = vector.shape_cast %142 : vector<20xf32> to vector<20x1xf32>
    %c10_i32 = arith.constant 10 : i32
    %144 = vector.broadcast %c10_i32 : i32 to vector<20x128xi32>
    %145 = arith.cmpi eq, %30, %144 : vector<20x128xi32>
    %146 = vector.shape_cast %143 : vector<20x1xf32> to vector<20x1xf32>
    %147 = vector.broadcast %146 : vector<20x1xf32> to vector<20x128xf32>
    %148 = arith.select %145, %147, %137 : vector<20x128xi1>, vector<20x128xf32>
    %c1_i32_31 = arith.constant 1 : i32
    %149 = arith.cmpi ne, %arg2, %c1_i32_31 : i32
    %150 = arith.extui %149 : i1 to i32
    %c0_i32_32 = arith.constant 0 : i32
    %151 = arith.cmpi ne, %150, %c0_i32_32 : i32
    scf.if %151 {
      %c0_35 = arith.constant 0 : index
      %c0_36 = arith.constant 0 : index
      %c0_37 = arith.constant 0 : index
      %155 = vector.load %arg5[%c0_35, %c0_36, %c0_37] : memref<1x20x128xf32, #tpu.memory_space<vmem>>, vector<1x20x128xf32>
      %156 = vector.shape_cast %155 : vector<1x20x128xf32> to vector<20x128xf32>
      %157 = vector.shape_cast %148 : vector<20x128xf32> to vector<1x20x128xf32>
      tpu.vector_store %arg5[%c0_35, %c0_36, %c0_37], %157 {strides = array<i32>} : memref<1x20x128xf32, #tpu.memory_space<vmem>>, vector<1x20x128xf32>,
    } else {
    }
    %c1_i32_33 = arith.constant 1 : i32
    %152 = arith.cmpi eq, %arg2, %c1_i32_33 : i32
    %153 = arith.extui %152 : i1 to i32
    %c0_i32_34 = arith.constant 0 : i32
    %154 = arith.cmpi ne, %153, %c0_i32_34 : i32
    scf.if %154 {
      %155 = math.sqrt %148 : vector<20x128xf32>
      %c0_35 = arith.constant 0 : index
      %c0_36 = arith.constant 0 : index
      %c0_37 = arith.constant 0 : index
      %156 = vector.load %arg5[%c0_35, %c0_36, %c0_37] : memref<1x20x128xf32, #tpu.memory_space<vmem>>, vector<1x20x128xf32>
      %157 = vector.shape_cast %156 : vector<1x20x128xf32> to vector<20x128xf32>
      %158 = vector.shape_cast %155 : vector<20x128xf32> to vector<1x20x128xf32>
      tpu.vector_store %arg5[%c0_35, %c0_36, %c0_37], %158 {strides = array<i32>} : memref<1x20x128xf32, #tpu.memory_space<vmem>>, vector<1x20x128xf32>,
    } else {
    }
    return
  }
  func.func @transform_0(%arg0: i32, %arg1: i32, %arg2: i32) -> (i32, i32, i32) {
    %c0_i32 = arith.constant 0 : i32
    %c0_i32_0 = arith.constant 0 : i32
    return %arg0, %c0_i32, %arg2 : i32, i32, i32
  }
  func.func @transform_1(%arg0: i32, %arg1: i32, %arg2: i32) -> (i32, i32, i32) {
    %c0_i32 = arith.constant 0 : i32
    %c0_i32_0 = arith.constant 0 : i32
    return %arg0, %arg1, %c0_i32 : i32, i32, i32
  }
  func.func @transform_2(%arg0: i32, %arg1: i32, %arg2: i32) -> (i32, i32, i32) {
    %c0_i32 = arith.constant 0 : i32
    %c0_i32_0 = arith.constant 0 : i32
    return %arg0, %arg1, %c0_i32 : i32, i32, i32
  }
}

</mosaic_0001>

<llo_original>
// kernel: custom-call.4
$region0: #{custom-call.4}
  %s0 = inlined_call_operand.vmem [shape: f32[2,2048], index: 0, kind: output, shape index: {}]

// kernel: knn_loss.1
$region0: #{knn_loss.1}
  #allocation0 [shape = 'u32[]', space=smem, size = 0x4, offset = 0x4, fixed_abs, tag = 'smem constant byte address 0x4 - core index']
  #allocation1 [shape = 'u32[144,128]{1,0:T(1,128)}', space=vmem, size = 0x12000, scoped, tag = 'internal scratch']
  %s0 = inlined_call_operand.vmem [shape: f32[2,3,2048], index: 0, kind: input, shape index: {}]
  %s1 = inlined_call_operand.vmem [shape: f32[2,20,3], index: 1, kind: input, shape index: {}]
  %s2 = inlined_call_operand.vmem [shape: f32[2,20,128], index: 2, kind: output, shape index: {}]
  %s3 = sld [smem:[#allocation0]]
  $region49: #{knn_loss.1} parent=0
    _
  %s5 = ssub.s32 1, %s3
  %s6 = scalar_select 0, %s5, %s3
  loop: start=0, step=1, limit=6
  $region2: #{knn_loss.1} parent=0 // loop_pre_header
    _
  $region3: #{knn_loss.1} parent=0 // loop_header
    %s8 = sphi 0, %s12
    %p9 = scmp.ge.s32.totalorder %s8, 6
    %s15 = sphi 0, %s34
    %s16 = sphi 0, %s30
    %s17 = sphi 0, %s26
    %s18 = sphi 0, %s15
    %s19 = sphi 0, %s16
    %s20 = sphi 0, %s17
    %s21 = sphi 0, %s18
    %s22 = sphi 0, %s19
    %s23 = sphi 0, %s20
    %s39 = sphi 0, %s41
    %s42 = sphi 0, %s39
    %s43 = sphi 0, %s42
    %s59 = sphi 0, %s43
    %s67 = sphi 0, %s69
    %s70 = sphi 0, %s67
    %s71 = sphi 0, %s70
    %s87 = sphi 0, %s71
    %s95 = sphi 0, %s97
    %s98 = sphi 0, %s95
    %s99 = sphi 0, %s98
    %s115 = sphi 0, %s99
  $region4: #{knn_loss.1} parent=0 // loop_header_branch
    %11 = sbr.rel (%p9) target = $region8
  $region5: #{knn_loss.1} parent=0 // loop_body
    %s13 = ssub.s32 %s8, 1
    %s14 = ssub.s32 %s8, 2
    %s24 = sadd.s32 1, %s17
    %p25 = scmp.ge.s32.totalorder %s24, 2
    %s26 = scalar_select %p25, 0, %s24
    %s27 = sadd.s32 1, %s16
    %s28 = scalar_select %p25, %s27, %s16
    %p29 = scmp.ge.s32.totalorder %s28, 1
    %s30 = scalar_select %p29, 0, %s28
    %s31 = sadd.s32 1, %s15
    %s32 = scalar_select %p29, %s31, %s15
    %p33 = scmp.ge.s32.totalorder %s32, 2
    %s34 = scalar_select %p33, 0, %s32
    %s35 = ssub.s32 %s15, %s34
    %s36 = ssub.s32 %s17, %s26
    %s37 = sor.u32 %s35, %s36
    %p38 = scmp.eq.s32.totalorder %s37, 0
    %s40 = sadd.s32 %s39, 1
    %s41 = scalar_select %p38, %s39, %s40
    %p44 = pneg %p38
    %p45 = scmp.eq.s32.totalorder %s8, 3
    %p46 = por %p44, %p45
    %p47 = scmp.ne.s32.totalorder %s39, %s42
    %p48 = scmp.eq.s32.totalorder %s8, 0
    %p49 = por %p47, %p48
    %p50 = scmp.ne.s32.totalorder %s39, %s42
    %p51 = scmp.eq.s32.totalorder %s13, 3
    %p52 = por %p50, %p51
    %p53 = scmp.ne.s32.totalorder %s42, %s43
    %p54 = scmp.eq.s32.totalorder %s13, 0
    %p55 = por %p53, %p54
    %p56 = scmp.ne.s32.totalorder %s42, %s43
    %p57 = scmp.eq.s32.totalorder %s14, 3
    %p58 = por %p56, %p57
    %p60 = scmp.ne.s32.totalorder %s43, %s59
    %p61 = scmp.eq.s32.totalorder %s14, 0
    %p62 = por %p60, %p61
    %s63 = ssub.s32 %s15, %s34
    %s64 = ssub.s32 %s16, %s30
    %s65 = sor.u32 %s63, %s64
    %p66 = scmp.eq.s32.totalorder %s65, 0
    %s68 = sadd.s32 %s67, 1
    %s69 = scalar_select %p66, %s67, %s68
    %p72 = pneg %p66
    %p73 = scmp.eq.s32.totalorder %s8, 3
    %p74 = por %p72, %p73
    %p75 = scmp.ne.s32.totalorder %s67, %s70
    %p76 = scmp.eq.s32.totalorder %s8, 0
    %p77 = por %p75, %p76
    %p78 = scmp.ne.s32.totalorder %s67, %s70
    %p79 = scmp.eq.s32.totalorder %s13, 3
    %p80 = por %p78, %p79
    %p81 = scmp.ne.s32.totalorder %s70, %s71
    %p82 = scmp.eq.s32.totalorder %s13, 0
    %p83 = por %p81, %p82
    %p84 = scmp.ne.s32.totalorder %s70, %s71
    %p85 = scmp.eq.s32.totalorder %s14, 3
    %p86 = por %p84, %p85
    %p88 = scmp.ne.s32.totalorder %s71, %s87
    %p89 = scmp.eq.s32.totalorder %s14, 0
    %p90 = por %p88, %p89
    %s91 = ssub.s32 %s15, %s34
    %s92 = ssub.s32 %s16, %s30
    %s93 = sor.u32 %s91, %s92
    %p94 = scmp.eq.s32.totalorder %s93, 0
    %s96 = sadd.s32 %s95, 1
    %s97 = scalar_select %p94, %s95, %s96
    %p100 = pneg %p94
    %p101 = scmp.eq.s32.totalorder %s8, 3
    %p102 = por %p100, %p101
    %p103 = scmp.ne.s32.totalorder %s95, %s98
    %p104 = scmp.eq.s32.totalorder %s8, 0
    %p105 = por %p103, %p104
    %p106 = scmp.ne.s32.totalorder %s95, %s98
    %p107 = scmp.eq.s32.totalorder %s13, 3
    %p108 = por %p106, %p107
    %p109 = scmp.ne.s32.totalorder %s98, %s99
    %p110 = scmp.eq.s32.totalorder %s13, 0
    %p111 = por %p109, %p110
    %p112 = scmp.ne.s32.totalorder %s98, %s99
    %p113 = scmp.eq.s32.totalorder %s14, 3
    %p114 = por %p112, %p113
    %p116 = scmp.ne.s32.totalorder %s99, %s115
    %p117 = scmp.eq.s32.totalorder %s14, 0
    %p118 = por %p116, %p117
    %p119 = scmp.le.s32.totalorder 1, %s8
    %p120 = scmp.lt.s32.totalorder %s8, 5
    %p121 = pnand %p119, %p120
    %p122 = pneg %p121
    // Predicated region
    $region9: #{knn_loss.1} parent=5 // pred_check
      _
    $region10: #{knn_loss.1} parent=5 // pred_check_branch
      %124 = sbr.rel (%p121) target = $region12
    $region11: #{knn_loss.1} parent=5 // pred_region
      %s125 = ssub.s32 %s8, 1
    $region12: #{knn_loss.1} parent=5 // pred_fallthru
      _
    %p126 = scmp.lt.s32.totalorder %s8, 4
    // Predicated region
    $region13: #{knn_loss.1} parent=5 // pred_check
      %p127 = pneg %p126
    $region14: #{knn_loss.1} parent=5 // pred_check_branch
      %129 = sbr.rel (%p127) target = $region16
    $region15: #{knn_loss.1} parent=5 // pred_region
      // Predicated region
      $region17: #{knn_loss.1} parent=15 // pred_check
        %p130 = pneg %p49
      $region18: #{knn_loss.1} parent=15 // pred_check_branch
        %132 = sbr.rel (%p130) target = $region20
      $region19: #{knn_loss.1} parent=15 // pred_region
        %s133 = smul.u32 8, %s17
        %p134 = scmp.lt.s32.totalorder %s15, 1
        %s135 = scalar_select %p134, %s15, 1
        %p136 = scmp.lt.s32.totalorder %s133, 15
        %s137 = scalar_select %p136, %s133, 15
        %s138 = smul.addr %s135, 16
        %s139 = sadd.s32 %s137, %s138
        %s140 = smul.addr %s139, 4
        %s141 = scalar_lea.vmem %s0, %s140
        %s142 = smul.u32 8, %s17
      $region20: #{knn_loss.1} parent=15 // pred_fallthru
        _
      // Predicated region
      $region21: #{knn_loss.1} parent=15 // pred_check
        %p143 = pneg %p77
      $region22: #{knn_loss.1} parent=15 // pred_check_branch
        %145 = sbr.rel (%p143) target = $region24
      $region23: #{knn_loss.1} parent=15 // pred_region
        %s146 = smul.u32 3, %s16
        %p147 = scmp.lt.s32.totalorder %s15, 1
        %s148 = scalar_select %p147, %s15, 1
        %p149 = scmp.lt.s32.totalorder %s146, 2
        %s150 = scalar_select %p149, %s146, 2
        %s151 = smul.addr %s148, 3
        %s152 = sadd.s32 %s150, %s151
        %s153 = smul.addr %s152, 8
        %s154 = scalar_lea.vmem %s1, %s153
        %s155 = smul.u32 3, %s16
      $region24: #{knn_loss.1} parent=15 // pred_fallthru
        _
    $region16: #{knn_loss.1} parent=5 // pred_fallthru
      _
    %p156 = scmp.le.s32.totalorder 1, %s8
    %p157 = scmp.lt.s32.totalorder %s8, 5
    %p158 = pnand %p156, %p157
    %p159 = pneg %p158
    // Predicated region
    $region25: #{knn_loss.1} parent=5 // pred_check
      _
    $region26: #{knn_loss.1} parent=5 // pred_check_branch
      %161 = sbr.rel (%p158) target = $region28
    $region27: #{knn_loss.1} parent=5 // pred_region
      %s162 = ssub.s32 %s8, 1
      %s163 = smul.u32 8, %s20
      %p164 = scmp.lt.s32.totalorder %s18, 1
      %s165 = scalar_select %p164, %s18, 1
      %p166 = scmp.lt.s32.totalorder %s163, 15
      %s167 = scalar_select %p166, %s163, 15
      %s168 = smul.addr %s165, 16
      %s169 = sadd.s32 %s167, %s168
      %s170 = smul.addr %s169, 4
      %s171 = scalar_lea.vmem %s0, %s170
      %p172 = pneg %p55
      %p173 = pneg %p52
      %s174 = smul.u32 3, %s19
      %p175 = scmp.lt.s32.totalorder %s18, 1
      %s176 = scalar_select %p175, %s18, 1
      %p177 = scmp.lt.s32.totalorder %s174, 2
      %s178 = scalar_select %p177, %s174, 2
      %s179 = smul.addr %s176, 3
      %s180 = sadd.s32 %s178, %s179
      %s181 = smul.addr %s180, 8
      %s182 = scalar_lea.vmem %s1, %s181
      %p183 = pneg %p83
      %p184 = pneg %p80
      %p185 = pneg %p111
      %p186 = pneg %p108
      %s187 = smul.u32 3, %s19
      %p188 = scmp.lt.s32.totalorder %s18, 1
      %s189 = scalar_select %p188, %s18, 1
      %p190 = scmp.lt.s32.totalorder %s187, 2
      %s191 = scalar_select %p190, %s187, 2
      %s192 = smul.addr %s189, 3
      %s193 = sadd.s32 %s191, %s192
      %s194 = smul.addr %s193, 8
      %s195 = scalar_lea.vmem %s2, %s194
      %s196 = smul.u32 8, %s20
      %p197 = scmp.lt.s32.totalorder %s18, 1
      %s198 = scalar_select %p197, %s18, 1
      %p199 = scmp.lt.s32.totalorder %s196, 15
      %s200 = scalar_select %p199, %s196, 15
      %s201 = smul.addr %s198, 16
      %s202 = sadd.s32 %s200, %s201
      %s203 = smul.addr %s202, 4
      %s204 = scalar_lea.vmem %s0, %s203
      %s205 = smul.u32 8, %s20
      %s206 = smul.u32 3, %s19
      %p207 = scmp.lt.s32.totalorder %s18, 1
      %s208 = scalar_select %p207, %s18, 1
      %p209 = scmp.lt.s32.totalorder %s206, 2
      %s210 = scalar_select %p209, %s206, 2
      %s211 = smul.addr %s208, 3
      %s212 = sadd.s32 %s210, %s211
      %s213 = smul.addr %s212, 8
      %s214 = scalar_lea.vmem %s1, %s213
      %s215 = smul.u32 3, %s19
      %s216 = smul.u32 3, %s19
      %p217 = scmp.lt.s32.totalorder %s18, 1
      %s218 = scalar_select %p217, %s18, 1
      %p219 = scmp.lt.s32.totalorder %s216, 2
      %s220 = scalar_select %p219, %s216, 2
      %s221 = smul.addr %s218, 3
      %s222 = sadd.s32 %s220, %s221
      %s223 = smul.addr %s222, 8
      %s224 = scalar_lea.vmem %s2, %s223
      %s225 = smul.u32 3, %s19
      %v226 = vld [vmem:[%s204] sm:$0x77]
      %v227 = vld [vmem:[%s204 + $0x8] sm:$0x77]
      %v228 = vld [vmem:[%s204 + $0x10] sm:$0x77]
      %v229 = vld [vmem:[%s204 + $0x18] sm:$0x77]
      %v230 = vld [vmem:[%s214] sm:$0xff]
      %v231 = vld [vmem:[%s214 + $0x8] sm:$0xff]
      %v232 = vld [vmem:[%s214 + $0x10] sm:$0xf]
      %234 = vset.pattern.permute.xlu0 0
      %235 = vperm.xlu0 %234, %v230
      %v236 = vpop.permute.xlu0 %235
      %239 = vset.pattern.permute.xlu0 0
      %240 = vperm.xlu0 %239, %v231
      %v241 = vpop.permute.xlu0 %240
      %244 = vset.pattern.permute.xlu0 0
      %245 = vperm.xlu0 %244, %v232
      %v246 = vpop.permute.xlu0 %245
      %v252 = vlaneseq
      %v253 = vshrl.u32 %v252, 7
      %v254 = vsub.s32 0, %v253
      %v255 = vrot.slane %v226, %v254
      %v256 = vlaneseq
      %v257 = vshrl.u32 %v256, 7
      %v258 = vsub.s32 4, %v257
      %v259 = vrot.slane %v226, %v258
      %v260 = vlaneseq
      %v261 = vshrl.u32 %v260, 7
      %v262 = vsub.s32 0, %v261
      %v263 = vrot.slane %v227, %v262
      %v264 = vlaneseq
      %v265 = vshrl.u32 %v264, 7
      %v266 = vsub.s32 4, %v265
      %v267 = vrot.slane %v227, %v266
      %v268 = vlaneseq
      %v269 = vshrl.u32 %v268, 7
      %v270 = vsub.s32 0, %v269
      %v271 = vrot.slane %v228, %v270
      %v272 = vlaneseq
      %v273 = vshrl.u32 %v272, 7
      %v274 = vsub.s32 4, %v273
      %v275 = vrot.slane %v228, %v274
      %v276 = vlaneseq
      %v277 = vshrl.u32 %v276, 7
      %v278 = vsub.s32 0, %v277
      %v279 = vrot.slane %v229, %v278
      %v280 = vlaneseq
      %v281 = vshrl.u32 %v280, 7
      %v282 = vsub.s32 4, %v281
      %v283 = vrot.slane %v229, %v282
      %v292 = vlaneseq
      %v293 = vshrl.u32 %v292, 7
      %v294 = vsub.s32 0, %v293
      %v295 = vrot.slane %v255, %v294
      %v296 = vlaneseq
      %v297 = vshrl.u32 %v296, 7
      %v298 = vsub.s32 0, %v297
      %v299 = vrot.slane %v259, %v298
      %v300 = vlaneseq
      %v301 = vshrl.u32 %v300, 7
      %v302 = vsub.s32 0, %v301
      %v303 = vrot.slane %v263, %v302
      %v304 = vlaneseq
      %v305 = vshrl.u32 %v304, 7
      %v306 = vsub.s32 0, %v305
      %v307 = vrot.slane %v267, %v306
      %v308 = vlaneseq
      %v309 = vshrl.u32 %v308, 7
      %v310 = vsub.s32 0, %v309
      %v311 = vrot.slane %v271, %v310
      %v312 = vlaneseq
      %v313 = vshrl.u32 %v312, 7
      %v314 = vsub.s32 0, %v313
      %v315 = vrot.slane %v275, %v314
      %v316 = vlaneseq
      %v317 = vshrl.u32 %v316, 7
      %v318 = vsub.s32 0, %v317
      %v319 = vrot.slane %v279, %v318
      %v320 = vlaneseq
      %v321 = vshrl.u32 %v320, 7
      %v322 = vsub.s32 0, %v321
      %v323 = vrot.slane %v283, %v322
      %v324 = vsub.f32 %v236, %v295
      %v325 = vsub.f32 %v236, %v299
      %v326 = vsub.f32 %v236, %v303
      %v327 = vsub.f32 %v236, %v307
      %v328 = vsub.f32 %v236, %v311
      %v329 = vsub.f32 %v236, %v315
      %v330 = vsub.f32 %v236, %v319
      %v331 = vsub.f32 %v236, %v323
      %v332 = vsub.f32 %v241, %v295
      %v333 = vsub.f32 %v241, %v299
      %v334 = vsub.f32 %v241, %v303
      %v335 = vsub.f32 %v241, %v307
      %v336 = vsub.f32 %v241, %v311
      %v337 = vsub.f32 %v241, %v315
      %v338 = vsub.f32 %v241, %v319
      %v339 = vsub.f32 %v241, %v323
      %v340 = vsub.f32 %v246, %v295
      %v341 = vsub.f32 %v246, %v299
      %v342 = vsub.f32 %v246, %v303
      %v343 = vsub.f32 %v246, %v307
      %v344 = vsub.f32 %v246, %v311
      %v345 = vsub.f32 %v246, %v315
      %v346 = vsub.f32 %v246, %v319
      %v347 = vsub.f32 %v246, %v323
      %v348 = vmul.f32 %v324, %v324
      %v349 = vmul.f32 %v325, %v325
      %v350 = vmul.f32 %v326, %v326
      %v351 = vmul.f32 %v327, %v327
      %v352 = vmul.f32 %v328, %v328
      %v353 = vmul.f32 %v329, %v329
      %v354 = vmul.f32 %v330, %v330
      %v355 = vmul.f32 %v331, %v331
      %v356 = vmul.f32 %v332, %v332
      %v357 = vmul.f32 %v333, %v333
      %v358 = vmul.f32 %v334, %v334
      %v359 = vmul.f32 %v335, %v335
      %v360 = vmul.f32 %v336, %v336
      %v361 = vmul.f32 %v337, %v337
      %v362 = vmul.f32 %v338, %v338
      %v363 = vmul.f32 %v339, %v339
      %v364 = vmul.f32 %v340, %v340
      %v365 = vmul.f32 %v341, %v341
      %v366 = vmul.f32 %v342, %v342
      %v367 = vmul.f32 %v343, %v343
      %v368 = vmul.f32 %v344, %v344
      %v369 = vmul.f32 %v345, %v345
      %v370 = vmul.f32 %v346, %v346
      %v371 = vmul.f32 %v347, %v347
      %372 = vset.pattern.permute.xlu0 1
      %373 = vperm.xlu0 %372, %v230
      %v374 = vpop.permute.xlu0 %373
      %376 = vset.pattern.permute.xlu0 1
      %377 = vperm.xlu0 %376, %v231
      %v378 = vpop.permute.xlu0 %377
      %380 = vset.pattern.permute.xlu0 1
      %381 = vperm.xlu0 %380, %v232
      %v382 = vpop.permute.xlu0 %381
      %v384 = vlaneseq
      %v385 = vshrl.u32 %v384, 7
      %v386 = vsub.s32 1, %v385
      %v387 = vrot.slane %v226, %v386
      %v388 = vlaneseq
      %v389 = vshrl.u32 %v388, 7
      %v390 = vsub.s32 5, %v389
      %v391 = vrot.slane %v226, %v390
      %v392 = vlaneseq
      %v393 = vshrl.u32 %v392, 7
      %v394 = vsub.s32 1, %v393
      %v395 = vrot.slane %v227, %v394
      %v396 = vlaneseq
      %v397 = vshrl.u32 %v396, 7
      %v398 = vsub.s32 5, %v397
      %v399 = vrot.slane %v227, %v398
      %v400 = vlaneseq
      %v401 = vshrl.u32 %v400, 7
      %v402 = vsub.s32 1, %v401
      %v403 = vrot.slane %v228, %v402
      %v404 = vlaneseq
      %v405 = vshrl.u32 %v404, 7
      %v406 = vsub.s32 5, %v405
      %v407 = vrot.slane %v228, %v406
      %v408 = vlaneseq
      %v409 = vshrl.u32 %v408, 7
      %v410 = vsub.s32 1, %v409
      %v411 = vrot.slane %v229, %v410
      %v412 = vlaneseq
      %v413 = vshrl.u32 %v412, 7
      %v414 = vsub.s32 5, %v413
      %v415 = vrot.slane %v229, %v414
      %v424 = vlaneseq
      %v425 = vshrl.u32 %v424, 7
      %v426 = vsub.s32 1, %v425
      %v427 = vrot.slane %v387, %v426
      %v428 = vlaneseq
      %v429 = vshrl.u32 %v428, 7
      %v430 = vsub.s32 1, %v429
      %v431 = vrot.slane %v391, %v430
      %v432 = vlaneseq
      %v433 = vshrl.u32 %v432, 7
      %v434 = vsub.s32 1, %v433
      %v435 = vrot.slane %v395, %v434
      %v436 = vlaneseq
      %v437 = vshrl.u32 %v436, 7
      %v438 = vsub.s32 1, %v437
      %v439 = vrot.slane %v399, %v438
      %v440 = vlaneseq
      %v441 = vshrl.u32 %v440, 7
      %v442 = vsub.s32 1, %v441
      %v443 = vrot.slane %v403, %v442
      %v444 = vlaneseq
      %v445 = vshrl.u32 %v444, 7
      %v446 = vsub.s32 1, %v445
      %v447 = vrot.slane %v407, %v446
      %v448 = vlaneseq
      %v449 = vshrl.u32 %v448, 7
      %v450 = vsub.s32 1, %v449
      %v451 = vrot.slane %v411, %v450
      %v452 = vlaneseq
      %v453 = vshrl.u32 %v452, 7
      %v454 = vsub.s32 1, %v453
      %v455 = vrot.slane %v415, %v454
      %v456 = vsub.f32 %v374, %v427
      %v457 = vsub.f32 %v374, %v431
      %v458 = vsub.f32 %v374, %v435
      %v459 = vsub.f32 %v374, %v439
      %v460 = vsub.f32 %v374, %v443
      %v461 = vsub.f32 %v374, %v447
      %v462 = vsub.f32 %v374, %v451
      %v463 = vsub.f32 %v374, %v455
      %v464 = vsub.f32 %v378, %v427
      %v465 = vsub.f32 %v378, %v431
      %v466 = vsub.f32 %v378, %v435
      %v467 = vsub.f32 %v378, %v439
      %v468 = vsub.f32 %v378, %v443
      %v469 = vsub.f32 %v378, %v447
      %v470 = vsub.f32 %v378, %v451
      %v471 = vsub.f32 %v378, %v455
      %v472 = vsub.f32 %v382, %v427
      %v473 = vsub.f32 %v382, %v431
      %v474 = vsub.f32 %v382, %v435
      %v475 = vsub.f32 %v382, %v439
      %v476 = vsub.f32 %v382, %v443
      %v477 = vsub.f32 %v382, %v447
      %v478 = vsub.f32 %v382, %v451
      %v479 = vsub.f32 %v382, %v455
      %v480 = vmul.f32 %v456, %v456
      %v481 = vmul.f32 %v457, %v457
      %v482 = vmul.f32 %v458, %v458
      %v483 = vmul.f32 %v459, %v459
      %v484 = vmul.f32 %v460, %v460
      %v485 = vmul.f32 %v461, %v461
      %v486 = vmul.f32 %v462, %v462
      %v487 = vmul.f32 %v463, %v463
      %v488 = vmul.f32 %v464, %v464
      %v489 = vmul.f32 %v465, %v465
      %v490 = vmul.f32 %v466, %v466
      %v491 = vmul.f32 %v467, %v467
      %v492 = vmul.f32 %v468, %v468
      %v493 = vmul.f32 %v469, %v469
      %v494 = vmul.f32 %v470, %v470
      %v495 = vmul.f32 %v471, %v471
      %v496 = vmul.f32 %v472, %v472
      %v497 = vmul.f32 %v473, %v473
      %v498 = vmul.f32 %v474, %v474
      %v499 = vmul.f32 %v475, %v475
      %v500 = vmul.f32 %v476, %v476
      %v501 = vmul.f32 %v477, %v477
      %v502 = vmul.f32 %v478, %v478
      %v503 = vmul.f32 %v479, %v479
      %v504 = vadd.f32 %v348, %v480
      %v505 = vadd.f32 %v349, %v481
      %v506 = vadd.f32 %v350, %v482
      %v507 = vadd.f32 %v351, %v483
      %v508 = vadd.f32 %v352, %v484
      %v509 = vadd.f32 %v353, %v485
      %v510 = vadd.f32 %v354, %v486
      %v511 = vadd.f32 %v355, %v487
      %v512 = vadd.f32 %v356, %v488
      %v513 = vadd.f32 %v357, %v489
      %v514 = vadd.f32 %v358, %v490
      %v515 = vadd.f32 %v359, %v491
      %v516 = vadd.f32 %v360, %v492
      %v517 = vadd.f32 %v361, %v493
      %v518 = vadd.f32 %v362, %v494
      %v519 = vadd.f32 %v363, %v495
      %v520 = vadd.f32 %v364, %v496
      %v521 = vadd.f32 %v365, %v497
      %v522 = vadd.f32 %v366, %v498
      %v523 = vadd.f32 %v367, %v499
      %v524 = vadd.f32 %v368, %v500
      %v525 = vadd.f32 %v369, %v501
      %v526 = vadd.f32 %v370, %v502
      %v527 = vadd.f32 %v371, %v503
      %528 = vset.pattern.permute.xlu0 2
      %529 = vperm.xlu0 %528, %v230
      %v530 = vpop.permute.xlu0 %529
      %532 = vset.pattern.permute.xlu0 2
      %533 = vperm.xlu0 %532, %v231
      %v534 = vpop.permute.xlu0 %533
      %536 = vset.pattern.permute.xlu0 2
      %537 = vperm.xlu0 %536, %v232
      %v538 = vpop.permute.xlu0 %537
      %v540 = vlaneseq
      %v541 = vshrl.u32 %v540, 7
      %v542 = vsub.s32 2, %v541
      %v543 = vrot.slane %v226, %v542
      %v544 = vlaneseq
      %v545 = vshrl.u32 %v544, 7
      %v546 = vsub.s32 6, %v545
      %v547 = vrot.slane %v226, %v546
      %v548 = vlaneseq
      %v549 = vshrl.u32 %v548, 7
      %v550 = vsub.s32 2, %v549
      %v551 = vrot.slane %v227, %v550
      %v552 = vlaneseq
      %v553 = vshrl.u32 %v552, 7
      %v554 = vsub.s32 6, %v553
      %v555 = vrot.slane %v227, %v554
      %v556 = vlaneseq
      %v557 = vshrl.u32 %v556, 7
      %v558 = vsub.s32 2, %v557
      %v559 = vrot.slane %v228, %v558
      %v560 = vlaneseq
      %v561 = vshrl.u32 %v560, 7
      %v562 = vsub.s32 6, %v561
      %v563 = vrot.slane %v228, %v562
      %v564 = vlaneseq
      %v565 = vshrl.u32 %v564, 7
      %v566 = vsub.s32 2, %v565
      %v567 = vrot.slane %v229, %v566
      %v568 = vlaneseq
      %v569 = vshrl.u32 %v568, 7
      %v570 = vsub.s32 6, %v569
      %v571 = vrot.slane %v229, %v570
      %v580 = vlaneseq
      %v581 = vshrl.u32 %v580, 7
      %v582 = vsub.s32 2, %v581
      %v583 = vrot.slane %v543, %v582
      %v584 = vlaneseq
      %v585 = vshrl.u32 %v584, 7
      %v586 = vsub.s32 2, %v585
      %v587 = vrot.slane %v547, %v586
      %v588 = vlaneseq
      %v589 = vshrl.u32 %v588, 7
      %v590 = vsub.s32 2, %v589
      %v591 = vrot.slane %v551, %v590
      %v592 = vlaneseq
      %v593 = vshrl.u32 %v592, 7
      %v594 = vsub.s32 2, %v593
      %v595 = vrot.slane %v555, %v594
      %v596 = vlaneseq
      %v597 = vshrl.u32 %v596, 7
      %v598 = vsub.s32 2, %v597
      %v599 = vrot.slane %v559, %v598
      %v600 = vlaneseq
      %v601 = vshrl.u32 %v600, 7
      %v602 = vsub.s32 2, %v601
      %v603 = vrot.slane %v563, %v602
      %v604 = vlaneseq
      %v605 = vshrl.u32 %v604, 7
      %v606 = vsub.s32 2, %v605
      %v607 = vrot.slane %v567, %v606
      %v608 = vlaneseq
      %v609 = vshrl.u32 %v608, 7
      %v610 = vsub.s32 2, %v609
      %v611 = vrot.slane %v571, %v610
      %v612 = vsub.f32 %v530, %v583
      %v613 = vsub.f32 %v530, %v587
      %v614 = vsub.f32 %v530, %v591
      %v615 = vsub.f32 %v530, %v595
      %v616 = vsub.f32 %v530, %v599
      %v617 = vsub.f32 %v530, %v603
      %v618 = vsub.f32 %v530, %v607
      %v619 = vsub.f32 %v530, %v611
      %v620 = vsub.f32 %v534, %v583
      %v621 = vsub.f32 %v534, %v587
      %v622 = vsub.f32 %v534, %v591
      %v623 = vsub.f32 %v534, %v595
      %v624 = vsub.f32 %v534, %v599
      %v625 = vsub.f32 %v534, %v603
      %v626 = vsub.f32 %v534, %v607
      %v627 = vsub.f32 %v534, %v611
      %v628 = vsub.f32 %v538, %v583
      %v629 = vsub.f32 %v538, %v587
      %v630 = vsub.f32 %v538, %v591
      %v631 = vsub.f32 %v538, %v595
      %v632 = vsub.f32 %v538, %v599
      %v633 = vsub.f32 %v538, %v603
      %v634 = vsub.f32 %v538, %v607
      %v635 = vsub.f32 %v538, %v611
      %v636 = vmul.f32 %v612, %v612
      %v637 = vmul.f32 %v613, %v613
      %v638 = vmul.f32 %v614, %v614
      %v639 = vmul.f32 %v615, %v615
      %v640 = vmul.f32 %v616, %v616
      %v641 = vmul.f32 %v617, %v617
      %v642 = vmul.f32 %v618, %v618
      %v643 = vmul.f32 %v619, %v619
      %v644 = vmul.f32 %v620, %v620
      %v645 = vmul.f32 %v621, %v621
      %v646 = vmul.f32 %v622, %v622
      %v647 = vmul.f32 %v623, %v623
      %v648 = vmul.f32 %v624, %v624
      %v649 = vmul.f32 %v625, %v625
      %v650 = vmul.f32 %v626, %v626
      %v651 = vmul.f32 %v627, %v627
      %v652 = vmul.f32 %v628, %v628
      %v653 = vmul.f32 %v629, %v629
      %v654 = vmul.f32 %v630, %v630
      %v655 = vmul.f32 %v631, %v631
      %v656 = vmul.f32 %v632, %v632
      %v657 = vmul.f32 %v633, %v633
      %v658 = vmul.f32 %v634, %v634
      %v659 = vmul.f32 %v635, %v635
      %v660 = vadd.f32 %v504, %v636
      %v661 = vadd.f32 %v505, %v637
      %v662 = vadd.f32 %v506, %v638
      %v663 = vadd.f32 %v507, %v639
      %v664 = vadd.f32 %v508, %v640
      %v665 = vadd.f32 %v509, %v641
      %v666 = vadd.f32 %v510, %v642
      %v667 = vadd.f32 %v511, %v643
      %v668 = vadd.f32 %v512, %v644
      %v669 = vadd.f32 %v513, %v645
      %v670 = vadd.f32 %v514, %v646
      %v671 = vadd.f32 %v515, %v647
      %v672 = vadd.f32 %v516, %v648
      %v673 = vadd.f32 %v517, %v649
      %v674 = vadd.f32 %v518, %v650
      %v675 = vadd.f32 %v519, %v651
      %v676 = vadd.f32 %v520, %v652
      %v677 = vadd.f32 %v521, %v653
      %v678 = vadd.f32 %v522, %v654
      %v679 = vadd.f32 %v523, %v655
      %v680 = vadd.f32 %v524, %v656
      %v681 = vadd.f32 %v525, %v657
      %v682 = vadd.f32 %v526, %v658
      %v683 = vadd.f32 %v527, %v659
      %v684 = vld [vmem:[%s224] sm:$0xff]
      %v685 = vld [vmem:[%s224 + $0x8] sm:$0xff]
      %v686 = vld [vmem:[%s224 + $0x10] sm:$0xf]
      %p687 = scmp.eq.s32.totalorder %s20, 0
      %s688 = scalar_select %p687, 1, 0
      %v689 = vstv %s688
      %vm690 = vcmp.eq.s32.totalorder %v689, 1
      %v691 = vsel %vm690, inf, %v684
      %v692 = vsel %vm690, inf, %v685
      %v693 = vsel %vm690, inf, %v686
      %v694 = vlaneseq
      %v695 = vand.u32 %v694, 127
      %v696 = vmin.f32 %v660, %v662
      %v697 = vmin.f32 %v661, %v663
      %v698 = vmin.f32 %v696, %v664
      %v699 = vmin.f32 %v697, %v665
      %v700 = vmin.f32 %v698, %v666
      %v701 = vmin.f32 %v699, %v667
      %v702 = vmin.f32 %v700, %v691
      %v703 = vmin.f32 %v702, %v701
      %704 = vmin.xlane.f32.xlu0 %v703
      %v705 = vpop.xlane.xlu0 %704
      %v706 = vmin.f32 %v668, %v670
      %v707 = vmin.f32 %v669, %v671
      %v708 = vmin.f32 %v706, %v672
      %v709 = vmin.f32 %v707, %v673
      %v710 = vmin.f32 %v708, %v674
      %v711 = vmin.f32 %v709, %v675
      %v712 = vmin.f32 %v710, %v692
      %v713 = vmin.f32 %v712, %v711
      %714 = vmin.xlane.f32.xlu0 %v713
      %v715 = vpop.xlane.xlu0 %714
      %vm716 = vcmask 1043456
      %v717 = vsel %vm716, %v676, inf
      %v718 = vsel %vm716, %v677, inf
      %v719 = vsel %vm716, %v678, inf
      %v720 = vmin.f32 %v717, %v719
      %v721 = vsel %vm716, %v679, inf
      %v722 = vmin.f32 %v718, %v721
      %v723 = vsel %vm716, %v680, inf
      %v724 = vmin.f32 %v720, %v723
      %v725 = vsel %vm716, %v681, inf
      %v726 = vmin.f32 %v722, %v725
      %v727 = vsel %vm716, %v682, inf
      %v728 = vmin.f32 %v724, %v727
      %v729 = vsel %vm716, %v683, inf
      %v730 = vmin.f32 %v726, %v729
      %v731 = vsel %vm716, %v693, inf
      %v732 = vmin.f32 %v728, %v731
      %v733 = vmin.f32 %v732, %v730
      %734 = vmin.xlane.f32.xlu0 %v733
      %v735 = vpop.xlane.xlu0 %734
      %vm736 = vcmp.eq.s32.totalorder %v695, 0
      %v737 = vsel %vm736, %v705, inf
      %v738 = vsel %vm736, %v715, inf
      %v739 = vsel %vm736, %v735, inf
      %vm740 = vcmp.eq.f32.partialorder %v660, %v705
      %vm741 = vcmp.eq.f32.partialorder %v661, %v705
      %vm742 = vcmp.eq.f32.partialorder %v662, %v705
      %vm743 = vcmp.eq.f32.partialorder %v663, %v705
      %vm744 = vcmp.eq.f32.partialorder %v664, %v705
      %vm745 = vcmp.eq.f32.partialorder %v665, %v705
      %vm746 = vcmp.eq.f32.partialorder %v666, %v705
      %vm747 = vcmp.eq.f32.partialorder %v667, %v705
      %vm748 = vcmp.eq.f32.partialorder %v691, %v705
      %vm749 = vcmp.eq.f32.partialorder %v668, %v715
      %vm750 = vcmp.eq.f32.partialorder %v669, %v715
      %vm751 = vcmp.eq.f32.partialorder %v670, %v715
      %vm752 = vcmp.eq.f32.partialorder %v671, %v715
      %vm753 = vcmp.eq.f32.partialorder %v672, %v715
      %vm754 = vcmp.eq.f32.partialorder %v673, %v715
      %vm755 = vcmp.eq.f32.partialorder %v674, %v715
      %vm756 = vcmp.eq.f32.partialorder %v675, %v715
      %vm757 = vcmp.eq.f32.partialorder %v692, %v715
      %vm758 = vcmp.eq.f32.partialorder %v676, %v735
      %vm759 = vcmp.eq.f32.partialorder %v677, %v735
      %vm760 = vcmp.eq.f32.partialorder %v678, %v735
      %vm761 = vcmp.eq.f32.partialorder %v679, %v735
      %vm762 = vcmp.eq.f32.partialorder %v680, %v735
      %vm763 = vcmp.eq.f32.partialorder %v681, %v735
      %vm764 = vcmp.eq.f32.partialorder %v682, %v735
      %vm765 = vcmp.eq.f32.partialorder %v683, %v735
      %vm766 = vcmp.eq.f32.partialorder %v693, %v735
      %v767 = vsel %vm740, inf, %v660
      %v768 = vsel %vm741, inf, %v661
      %v769 = vsel %vm742, inf, %v662
      %v770 = vsel %vm743, inf, %v663
      %v771 = vsel %vm744, inf, %v664
      %v772 = vsel %vm745, inf, %v665
      %v773 = vsel %vm746, inf, %v666
      %v774 = vsel %vm747, inf, %v667
      %v775 = vsel %vm748, inf, %v691
      %v776 = vsel %vm749, inf, %v668
      %v777 = vsel %vm750, inf, %v669
      %v778 = vsel %vm751, inf, %v670
      %v779 = vsel %vm752, inf, %v671
      %v780 = vsel %vm753, inf, %v672
      %v781 = vsel %vm754, inf, %v673
      %v782 = vsel %vm755, inf, %v674
      %v783 = vsel %vm756, inf, %v675
      %v784 = vsel %vm757, inf, %v692
      %v785 = vsel %vm758, inf, %v676
      %v786 = vsel %vm759, inf, %v677
      %v787 = vsel %vm760, inf, %v678
      %v788 = vsel %vm761, inf, %v679
      %v789 = vsel %vm762, inf, %v680
      %v790 = vsel %vm763, inf, %v681
      %v791 = vsel %vm764, inf, %v682
      %v792 = vsel %vm765, inf, %v683
      %v793 = vsel %vm766, inf, %v693
      %v794 = vmin.f32 %v767, %v769
      %v795 = vmin.f32 %v768, %v770
      %v796 = vmin.f32 %v794, %v771
      %v797 = vmin.f32 %v795, %v772
      %v798 = vmin.f32 %v796, %v773
      %v799 = vmin.f32 %v797, %v774
      %v800 = vmin.f32 %v798, %v775
      %v801 = vmin.f32 %v800, %v799
      %802 = vmin.xlane.f32.xlu0 %v801
      %v803 = vpop.xlane.xlu0 %802
      %v804 = vmin.f32 %v776, %v778
      %v805 = vmin.f32 %v777, %v779
      %v806 = vmin.f32 %v804, %v780
      %v807 = vmin.f32 %v805, %v781
      %v808 = vmin.f32 %v806, %v782
      %v809 = vmin.f32 %v807, %v783
      %v810 = vmin.f32 %v808, %v784
      %v811 = vmin.f32 %v810, %v809
      %812 = vmin.xlane.f32.xlu0 %v811
      %v813 = vpop.xlane.xlu0 %812
      %v814 = vsel %vm716, %v785, inf
      %v815 = vsel %vm716, %v786, inf
      %v816 = vsel %vm716, %v787, inf
      %v817 = vmin.f32 %v814, %v816
      %v818 = vsel %vm716, %v788, inf
      %v819 = vmin.f32 %v815, %v818
      %v820 = vsel %vm716, %v789, inf
      %v821 = vmin.f32 %v817, %v820
      %v822 = vsel %vm716, %v790, inf
      %v823 = vmin.f32 %v819, %v822
      %v824 = vsel %vm716, %v791, inf
      %v825 = vmin.f32 %v821, %v824
      %v826 = vsel %vm716, %v792, inf
      %v827 = vmin.f32 %v823, %v826
      %v828 = vsel %vm716, %v793, inf
      %v829 = vmin.f32 %v825, %v828
      %v830 = vmin.f32 %v829, %v827
      %831 = vmin.xlane.f32.xlu0 %v830
      %v832 = vpop.xlane.xlu0 %831
      %vm833 = vcmp.eq.s32.totalorder %v695, 1
      %v834 = vsel %vm833, %v803, %v737
      %v835 = vsel %vm833, %v813, %v738
      %v836 = vsel %vm833, %v832, %v739
      %vm837 = vcmp.eq.f32.partialorder %v767, %v803
      %vm838 = vcmp.eq.f32.partialorder %v768, %v803
      %vm839 = vcmp.eq.f32.partialorder %v769, %v803
      %vm840 = vcmp.eq.f32.partialorder %v770, %v803
      %vm841 = vcmp.eq.f32.partialorder %v771, %v803
      %vm842 = vcmp.eq.f32.partialorder %v772, %v803
      %vm843 = vcmp.eq.f32.partialorder %v773, %v803
      %vm844 = vcmp.eq.f32.partialorder %v774, %v803
      %vm845 = vcmp.eq.f32.partialorder %v775, %v803
      %vm846 = vcmp.eq.f32.partialorder %v776, %v813
      %vm847 = vcmp.eq.f32.partialorder %v777, %v813
      %vm848 = vcmp.eq.f32.partialorder %v778, %v813
      %vm849 = vcmp.eq.f32.partialorder %v779, %v813
      %vm850 = vcmp.eq.f32.partialorder %v780, %v813
      %vm851 = vcmp.eq.f32.partialorder %v781, %v813
      %vm852 = vcmp.eq.f32.partialorder %v782, %v813
      %vm853 = vcmp.eq.f32.partialorder %v783, %v813
      %vm854 = vcmp.eq.f32.partialorder %v784, %v813
      %vm855 = vcmp.eq.f32.partialorder %v785, %v832
      %vm856 = vcmp.eq.f32.partialorder %v786, %v832
      %vm857 = vcmp.eq.f32.partialorder %v787, %v832
      %vm858 = vcmp.eq.f32.partialorder %v788, %v832
      %vm859 = vcmp.eq.f32.partialorder %v789, %v832
      %vm860 = vcmp.eq.f32.partialorder %v790, %v832
      %vm861 = vcmp.eq.f32.partialorder %v791, %v832
      %vm862 = vcmp.eq.f32.partialorder %v792, %v832
      %vm863 = vcmp.eq.f32.partialorder %v793, %v832
      %v864 = vsel %vm837, inf, %v767
      %v865 = vsel %vm838, inf, %v768
      %v866 = vsel %vm839, inf, %v769
      %v867 = vsel %vm840, inf, %v770
      %v868 = vsel %vm841, inf, %v771
      %v869 = vsel %vm842, inf, %v772
      %v870 = vsel %vm843, inf, %v773
      %v871 = vsel %vm844, inf, %v774
      %v872 = vsel %vm845, inf, %v775
      %v873 = vsel %vm846, inf, %v776
      %v874 = vsel %vm847, inf, %v777
      %v875 = vsel %vm848, inf, %v778
      %v876 = vsel %vm849, inf, %v779
      %v877 = vsel %vm850, inf, %v780
      %v878 = vsel %vm851, inf, %v781
      %v879 = vsel %vm852, inf, %v782
      %v880 = vsel %vm853, inf, %v783
      %v881 = vsel %vm854, inf, %v784
      %v882 = vsel %vm855, inf, %v785
      %v883 = vsel %vm856, inf, %v786
      %v884 = vsel %vm857, inf, %v787
      %v885 = vsel %vm858, inf, %v788
      %v886 = vsel %vm859, inf, %v789
      %v887 = vsel %vm860, inf, %v790
      %v888 = vsel %vm861, inf, %v791
      %v889 = vsel %vm862, inf, %v792
      %v890 = vsel %vm863, inf, %v793
      %v891 = vmin.f32 %v864, %v866
      %v892 = vmin.f32 %v865, %v867
      %v893 = vmin.f32 %v891, %v868
      %v894 = vmin.f32 %v892, %v869
      %v895 = vmin.f32 %v893, %v870
      %v896 = vmin.f32 %v894, %v871
      %v897 = vmin.f32 %v895, %v872
      %v898 = vmin.f32 %v897, %v896
      %899 = vmin.xlane.f32.xlu0 %v898
      %v900 = vpop.xlane.xlu0 %899
      %v901 = vmin.f32 %v873, %v875
      %v902 = vmin.f32 %v874, %v876
      %v903 = vmin.f32 %v901, %v877
      %v904 = vmin.f32 %v902, %v878
      %v905 = vmin.f32 %v903, %v879
      %v906 = vmin.f32 %v904, %v880
      %v907 = vmin.f32 %v905, %v881
      %v908 = vmin.f32 %v907, %v906
      %909 = vmin.xlane.f32.xlu0 %v908
      %v910 = vpop.xlane.xlu0 %909
      %v911 = vsel %vm716, %v882, inf
      %v912 = vsel %vm716, %v883, inf
      %v913 = vsel %vm716, %v884, inf
      %v914 = vmin.f32 %v911, %v913
      %v915 = vsel %vm716, %v885, inf
      %v916 = vmin.f32 %v912, %v915
      %v917 = vsel %vm716, %v886, inf
      %v918 = vmin.f32 %v914, %v917
      %v919 = vsel %vm716, %v887, inf
      %v920 = vmin.f32 %v916, %v919
      %v921 = vsel %vm716, %v888, inf
      %v922 = vmin.f32 %v918, %v921
      %v923 = vsel %vm716, %v889, inf
      %v924 = vmin.f32 %v920, %v923
      %v925 = vsel %vm716, %v890, inf
      %v926 = vmin.f32 %v922, %v925
      %v927 = vmin.f32 %v926, %v924
      %928 = vmin.xlane.f32.xlu0 %v927
      %v929 = vpop.xlane.xlu0 %928
      %vm930 = vcmp.eq.s32.totalorder %v695, 2
      %v931 = vsel %vm930, %v900, %v834
      %v932 = vsel %vm930, %v910, %v835
      %v933 = vsel %vm930, %v929, %v836
      %vm934 = vcmp.eq.f32.partialorder %v864, %v900
      %vm935 = vcmp.eq.f32.partialorder %v865, %v900
      %vm936 = vcmp.eq.f32.partialorder %v866, %v900
      %vm937 = vcmp.eq.f32.partialorder %v867, %v900
      %vm938 = vcmp.eq.f32.partialorder %v868, %v900
      %vm939 = vcmp.eq.f32.partialorder %v869, %v900
      %vm940 = vcmp.eq.f32.partialorder %v870, %v900
      %vm941 = vcmp.eq.f32.partialorder %v871, %v900
      %vm942 = vcmp.eq.f32.partialorder %v872, %v900
      %vm943 = vcmp.eq.f32.partialorder %v873, %v910
      %vm944 = vcmp.eq.f32.partialorder %v874, %v910
      %vm945 = vcmp.eq.f32.partialorder %v875, %v910
      %vm946 = vcmp.eq.f32.partialorder %v876, %v910
      %vm947 = vcmp.eq.f32.partialorder %v877, %v910
      %vm948 = vcmp.eq.f32.partialorder %v878, %v910
      %vm949 = vcmp.eq.f32.partialorder %v879, %v910
      %vm950 = vcmp.eq.f32.partialorder %v880, %v910
      %vm951 = vcmp.eq.f32.partialorder %v881, %v910
      %vm952 = vcmp.eq.f32.partialorder %v882, %v929
      %vm953 = vcmp.eq.f32.partialorder %v883, %v929
      %vm954 = vcmp.eq.f32.partialorder %v884, %v929
      %vm955 = vcmp.eq.f32.partialorder %v885, %v929
      %vm956 = vcmp.eq.f32.partialorder %v886, %v929
      %vm957 = vcmp.eq.f32.partialorder %v887, %v929
      %vm958 = vcmp.eq.f32.partialorder %v888, %v929
      %vm959 = vcmp.eq.f32.partialorder %v889, %v929
      %vm960 = vcmp.eq.f32.partialorder %v890, %v929
      %v961 = vsel %vm934, inf, %v864
      %v962 = vsel %vm935, inf, %v865
      %v963 = vsel %vm936, inf, %v866
      %v964 = vsel %vm937, inf, %v867
      %v965 = vsel %vm938, inf, %v868
      %v966 = vsel %vm939, inf, %v869
      %v967 = vsel %vm940, inf, %v870
      %v968 = vsel %vm941, inf, %v871
      %v969 = vsel %vm942, inf, %v872
      %v970 = vsel %vm943, inf, %v873
      %v971 = vsel %vm944, inf, %v874
      %v972 = vsel %vm945, inf, %v875
      %v973 = vsel %vm946, inf, %v876
      %v974 = vsel %vm947, inf, %v877
      %v975 = vsel %vm948, inf, %v878
      %v976 = vsel %vm949, inf, %v879
      %v977 = vsel %vm950, inf, %v880
      %v978 = vsel %vm951, inf, %v881
      %v979 = vsel %vm952, inf, %v882
      %v980 = vsel %vm953, inf, %v883
      %v981 = vsel %vm954, inf, %v884
      %v982 = vsel %vm955, inf, %v885
      %v983 = vsel %vm956, inf, %v886
      %v984 = vsel %vm957, inf, %v887
      %v985 = vsel %vm958, inf, %v888
      %v986 = vsel %vm959, inf, %v889
      %v987 = vsel %vm960, inf, %v890
      %v988 = vmin.f32 %v961, %v963
      %v989 = vmin.f32 %v962, %v964
      %v990 = vmin.f32 %v988, %v965
      %v991 = vmin.f32 %v989, %v966
      %v992 = vmin.f32 %v990, %v967
      %v993 = vmin.f32 %v991, %v968
      %v994 = vmin.f32 %v992, %v969
      %v995 = vmin.f32 %v994, %v993
      %996 = vmin.xlane.f32.xlu0 %v995
      %v997 = vpop.xlane.xlu0 %996
      %v998 = vmin.f32 %v970, %v972
      %v999 = vmin.f32 %v971, %v973
      %v1000 = vmin.f32 %v998, %v974
      %v1001 = vmin.f32 %v999, %v975
      %v1002 = vmin.f32 %v1000, %v976
      %v1003 = vmin.f32 %v1001, %v977
      %v1004 = vmin.f32 %v1002, %v978
      %v1005 = vmin.f32 %v1004, %v1003
      %1006 = vmin.xlane.f32.xlu0 %v1005
      %v1007 = vpop.xlane.xlu0 %1006
      %v1008 = vsel %vm716, %v979, inf
      %v1009 = vsel %vm716, %v980, inf
      %v1010 = vsel %vm716, %v981, inf
      %v1011 = vmin.f32 %v1008, %v1010
      %v1012 = vsel %vm716, %v982, inf
      %v1013 = vmin.f32 %v1009, %v1012
      %v1014 = vsel %vm716, %v983, inf
      %v1015 = vmin.f32 %v1011, %v1014
      %v1016 = vsel %vm716, %v984, inf
      %v1017 = vmin.f32 %v1013, %v1016
      %v1018 = vsel %vm716, %v985, inf
      %v1019 = vmin.f32 %v1015, %v1018
      %v1020 = vsel %vm716, %v986, inf
      %v1021 = vmin.f32 %v1017, %v1020
      %v1022 = vsel %vm716, %v987, inf
      %v1023 = vmin.f32 %v1019, %v1022
      %v1024 = vmin.f32 %v1023, %v1021
      %1025 = vmin.xlane.f32.xlu0 %v1024
      %v1026 = vpop.xlane.xlu0 %1025
      %vm1027 = vcmp.eq.s32.totalorder %v695, 3
      %v1028 = vsel %vm1027, %v997, %v931
      %v1029 = vsel %vm1027, %v1007, %v932
      %v1030 = vsel %vm1027, %v1026, %v933
      %vm1031 = vcmp.eq.f32.partialorder %v961, %v997
      %vm1032 = vcmp.eq.f32.partialorder %v962, %v997
      %vm1033 = vcmp.eq.f32.partialorder %v963, %v997
      %vm1034 = vcmp.eq.f32.partialorder %v964, %v997
      %vm1035 = vcmp.eq.f32.partialorder %v965, %v997
      %vm1036 = vcmp.eq.f32.partialorder %v966, %v997
      %vm1037 = vcmp.eq.f32.partialorder %v967, %v997
      %vm1038 = vcmp.eq.f32.partialorder %v968, %v997
      %vm1039 = vcmp.eq.f32.partialorder %v969, %v997
      %vm1040 = vcmp.eq.f32.partialorder %v970, %v1007
      %vm1041 = vcmp.eq.f32.partialorder %v971, %v1007
      %vm1042 = vcmp.eq.f32.partialorder %v972, %v1007
      %vm1043 = vcmp.eq.f32.partialorder %v973, %v1007
      %vm1044 = vcmp.eq.f32.partialorder %v974, %v1007
      %vm1045 = vcmp.eq.f32.partialorder %v975, %v1007
      %vm1046 = vcmp.eq.f32.partialorder %v976, %v1007
      %vm1047 = vcmp.eq.f32.partialorder %v977, %v1007
      %vm1048 = vcmp.eq.f32.partialorder %v978, %v1007
      %vm1049 = vcmp.eq.f32.partialorder %v979, %v1026
      %vm1050 = vcmp.eq.f32.partialorder %v980, %v1026
      %vm1051 = vcmp.eq.f32.partialorder %v981, %v1026
      %vm1052 = vcmp.eq.f32.partialorder %v982, %v1026
      %vm1053 = vcmp.eq.f32.partialorder %v983, %v1026
      %vm1054 = vcmp.eq.f32.partialorder %v984, %v1026
      %vm1055 = vcmp.eq.f32.partialorder %v985, %v1026
      %vm1056 = vcmp.eq.f32.partialorder %v986, %v1026
      %vm1057 = vcmp.eq.f32.partialorder %v987, %v1026
      %v1058 = vsel %vm1031, inf, %v961
      %v1059 = vsel %vm1032, inf, %v962
      %v1060 = vsel %vm1033, inf, %v963
      %v1061 = vsel %vm1034, inf, %v964
      %v1062 = vsel %vm1035, inf, %v965
      %v1063 = vsel %vm1036, inf, %v966
      %v1064 = vsel %vm1037, inf, %v967
      %v1065 = vsel %vm1038, inf, %v968
      %v1066 = vsel %vm1039, inf, %v969
      %v1067 = vsel %vm1040, inf, %v970
      %v1068 = vsel %vm1041, inf, %v971
      %v1069 = vsel %vm1042, inf, %v972
      %v1070 = vsel %vm1043, inf, %v973
      %v1071 = vsel %vm1044, inf, %v974
      %v1072 = vsel %vm1045, inf, %v975
      %v1073 = vsel %vm1046, inf, %v976
      %v1074 = vsel %vm1047, inf, %v977
      %v1075 = vsel %vm1048, inf, %v978
      %v1076 = vsel %vm1049, inf, %v979
      %v1077 = vsel %vm1050, inf, %v980
      %v1078 = vsel %vm1051, inf, %v981
      %v1079 = vsel %vm1052, inf, %v982
      %v1080 = vsel %vm1053, inf, %v983
      %v1081 = vsel %vm1054, inf, %v984
      %v1082 = vsel %vm1055, inf, %v985
      %v1083 = vsel %vm1056, inf, %v986
      %v1084 = vsel %vm1057, inf, %v987
      %v1085 = vmin.f32 %v1058, %v1060
      %v1086 = vmin.f32 %v1059, %v1061
      %v1087 = vmin.f32 %v1085, %v1062
      %v1088 = vmin.f32 %v1086, %v1063
      %v1089 = vmin.f32 %v1087, %v1064
      %v1090 = vmin.f32 %v1088, %v1065
      %v1091 = vmin.f32 %v1089, %v1066
      %v1092 = vmin.f32 %v1091, %v1090
      %1093 = vmin.xlane.f32.xlu0 %v1092
      %v1094 = vpop.xlane.xlu0 %1093
      %v1095 = vmin.f32 %v1067, %v1069
      %v1096 = vmin.f32 %v1068, %v1070
      %v1097 = vmin.f32 %v1095, %v1071
      %v1098 = vmin.f32 %v1096, %v1072
      %v1099 = vmin.f32 %v1097, %v1073
      %v1100 = vmin.f32 %v1098, %v1074
      %v1101 = vmin.f32 %v1099, %v1075
      %v1102 = vmin.f32 %v1101, %v1100
      %1103 = vmin.xlane.f32.xlu0 %v1102
      %v1104 = vpop.xlane.xlu0 %1103
      %v1105 = vsel %vm716, %v1076, inf
      %v1106 = vsel %vm716, %v1077, inf
      %v1107 = vsel %vm716, %v1078, inf
      %v1108 = vmin.f32 %v1105, %v1107
      %v1109 = vsel %vm716, %v1079, inf
      %v1110 = vmin.f32 %v1106, %v1109
      %v1111 = vsel %vm716, %v1080, inf
      %v1112 = vmin.f32 %v1108, %v1111
      %v1113 = vsel %vm716, %v1081, inf
      %v1114 = vmin.f32 %v1110, %v1113
      %v1115 = vsel %vm716, %v1082, inf
      %v1116 = vmin.f32 %v1112, %v1115
      %v1117 = vsel %vm716, %v1083, inf
      %v1118 = vmin.f32 %v1114, %v1117
      %v1119 = vsel %vm716, %v1084, inf
      %v1120 = vmin.f32 %v1116, %v1119
      %v1121 = vmin.f32 %v1120, %v1118
      %1122 = vmin.xlane.f32.xlu0 %v1121
      %v1123 = vpop.xlane.xlu0 %1122
      %vm1124 = vcmp.eq.s32.totalorder %v695, 4
      %v1125 = vsel %vm1124, %v1094, %v1028
      %v1126 = vsel %vm1124, %v1104, %v1029
      %v1127 = vsel %vm1124, %v1123, %v1030
      %vm1128 = vcmp.eq.f32.partialorder %v1058, %v1094
      %vm1129 = vcmp.eq.f32.partialorder %v1059, %v1094
      %vm1130 = vcmp.eq.f32.partialorder %v1060, %v1094
      %vm1131 = vcmp.eq.f32.partialorder %v1061, %v1094
      %vm1132 = vcmp.eq.f32.partialorder %v1062, %v1094
      %vm1133 = vcmp.eq.f32.partialorder %v1063, %v1094
      %vm1134 = vcmp.eq.f32.partialorder %v1064, %v1094
      %vm1135 = vcmp.eq.f32.partialorder %v1065, %v1094
      %vm1136 = vcmp.eq.f32.partialorder %v1066, %v1094
      %vm1137 = vcmp.eq.f32.partialorder %v1067, %v1104
      %vm1138 = vcmp.eq.f32.partialorder %v1068, %v1104
      %vm1139 = vcmp.eq.f32.partialorder %v1069, %v1104
      %vm1140 = vcmp.eq.f32.partialorder %v1070, %v1104
      %vm1141 = vcmp.eq.f32.partialorder %v1071, %v1104
      %vm1142 = vcmp.eq.f32.partialorder %v1072, %v1104
      %vm1143 = vcmp.eq.f32.partialorder %v1073, %v1104
      %vm1144 = vcmp.eq.f32.partialorder %v1074, %v1104
      %vm1145 = vcmp.eq.f32.partialorder %v1075, %v1104
      %vm1146 = vcmp.eq.f32.partialorder %v1076, %v1123
      %vm1147 = vcmp.eq.f32.partialorder %v1077, %v1123
      %vm1148 = vcmp.eq.f32.partialorder %v1078, %v1123
      %vm1149 = vcmp.eq.f32.partialorder %v1079, %v1123
      %vm1150 = vcmp.eq.f32.partialorder %v1080, %v1123
      %vm1151 = vcmp.eq.f32.partialorder %v1081, %v1123
      %vm1152 = vcmp.eq.f32.partialorder %v1082, %v1123
      %vm1153 = vcmp.eq.f32.partialorder %v1083, %v1123
      %vm1154 = vcmp.eq.f32.partialorder %v1084, %v1123
      %v1155 = vsel %vm1128, inf, %v1058
      %v1156 = vsel %vm1129, inf, %v1059
      %v1157 = vsel %vm1130, inf, %v1060
      %v1158 = vsel %vm1131, inf, %v1061
      %v1159 = vsel %vm1132, inf, %v1062
      %v1160 = vsel %vm1133, inf, %v1063
      %v1161 = vsel %vm1134, inf, %v1064
      %v1162 = vsel %vm1135, inf, %v1065
      %v1163 = vsel %vm1136, inf, %v1066
      %v1164 = vsel %vm1137, inf, %v1067
      %v1165 = vsel %vm1138, inf, %v1068
      %v1166 = vsel %vm1139, inf, %v1069
      %v1167 = vsel %vm1140, inf, %v1070
      %v1168 = vsel %vm1141, inf, %v1071
      %v1169 = vsel %vm1142, inf, %v1072
      %v1170 = vsel %vm1143, inf, %v1073
      %v1171 = vsel %vm1144, inf, %v1074
      %v1172 = vsel %vm1145, inf, %v1075
      %v1173 = vsel %vm1146, inf, %v1076
      %v1174 = vsel %vm1147, inf, %v1077
      %v1175 = vsel %vm1148, inf, %v1078
      %v1176 = vsel %vm1149, inf, %v1079
      %v1177 = vsel %vm1150, inf, %v1080
      %v1178 = vsel %vm1151, inf, %v1081
      %v1179 = vsel %vm1152, inf, %v1082
      %v1180 = vsel %vm1153, inf, %v1083
      %v1181 = vsel %vm1154, inf, %v1084
      %v1182 = vmin.f32 %v1155, %v1157
      %v1183 = vmin.f32 %v1156, %v1158
      %v1184 = vmin.f32 %v1182, %v1159
      %v1185 = vmin.f32 %v1183, %v1160
      %v1186 = vmin.f32 %v1184, %v1161
      %v1187 = vmin.f32 %v1185, %v1162
      %v1188 = vmin.f32 %v1186, %v1163
      %v1189 = vmin.f32 %v1188, %v1187
      %1190 = vmin.xlane.f32.xlu0 %v1189
      %v1191 = vpop.xlane.xlu0 %1190
      %v1192 = vmin.f32 %v1164, %v1166
      %v1193 = vmin.f32 %v1165, %v1167
      %v1194 = vmin.f32 %v1192, %v1168
      %v1195 = vmin.f32 %v1193, %v1169
      %v1196 = vmin.f32 %v1194, %v1170
      %v1197 = vmin.f32 %v1195, %v1171
      %v1198 = vmin.f32 %v1196, %v1172
      %v1199 = vmin.f32 %v1198, %v1197
      %1200 = vmin.xlane.f32.xlu0 %v1199
      %v1201 = vpop.xlane.xlu0 %1200
      %v1202 = vsel %vm716, %v1173, inf
      %v1203 = vsel %vm716, %v1174, inf
      %v1204 = vsel %vm716, %v1175, inf
      %v1205 = vmin.f32 %v1202, %v1204
      %v1206 = vsel %vm716, %v1176, inf
      %v1207 = vmin.f32 %v1203, %v1206
      %v1208 = vsel %vm716, %v1177, inf
      %v1209 = vmin.f32 %v1205, %v1208
      %v1210 = vsel %vm716, %v1178, inf
      %v1211 = vmin.f32 %v1207, %v1210
      %v1212 = vsel %vm716, %v1179, inf
      %v1213 = vmin.f32 %v1209, %v1212
      %v1214 = vsel %vm716, %v1180, inf
      %v1215 = vmin.f32 %v1211, %v1214
      %v1216 = vsel %vm716, %v1181, inf
      %v1217 = vmin.f32 %v1213, %v1216
      %v1218 = vmin.f32 %v1217, %v1215
      %1219 = vmin.xlane.f32.xlu0 %v1218
      %v1220 = vpop.xlane.xlu0 %1219
      %vm1221 = vcmp.eq.s32.totalorder %v695, 5
      %v1222 = vsel %vm1221, %v1191, %v1125
      %v1223 = vsel %vm1221, %v1201, %v1126
      %v1224 = vsel %vm1221, %v1220, %v1127
      %vm1225 = vcmp.eq.f32.partialorder %v1155, %v1191
      %vm1226 = vcmp.eq.f32.partialorder %v1156, %v1191
      %vm1227 = vcmp.eq.f32.partialorder %v1157, %v1191
      %vm1228 = vcmp.eq.f32.partialorder %v1158, %v1191
      %vm1229 = vcmp.eq.f32.partialorder %v1159, %v1191
      %vm1230 = vcmp.eq.f32.partialorder %v1160, %v1191
      %vm1231 = vcmp.eq.f32.partialorder %v1161, %v1191
      %vm1232 = vcmp.eq.f32.partialorder %v1162, %v1191
      %vm1233 = vcmp.eq.f32.partialorder %v1163, %v1191
      %vm1234 = vcmp.eq.f32.partialorder %v1164, %v1201
      %vm1235 = vcmp.eq.f32.partialorder %v1165, %v1201
      %vm1236 = vcmp.eq.f32.partialorder %v1166, %v1201
      %vm1237 = vcmp.eq.f32.partialorder %v1167, %v1201
      %vm1238 = vcmp.eq.f32.partialorder %v1168, %v1201
      %vm1239 = vcmp.eq.f32.partialorder %v1169, %v1201
      %vm1240 = vcmp.eq.f32.partialorder %v1170, %v1201
      %vm1241 = vcmp.eq.f32.partialorder %v1171, %v1201
      %vm1242 = vcmp.eq.f32.partialorder %v1172, %v1201
      %vm1243 = vcmp.eq.f32.partialorder %v1173, %v1220
      %vm1244 = vcmp.eq.f32.partialorder %v1174, %v1220
      %vm1245 = vcmp.eq.f32.partialorder %v1175, %v1220
      %vm1246 = vcmp.eq.f32.partialorder %v1176, %v1220
      %vm1247 = vcmp.eq.f32.partialorder %v1177, %v1220
      %vm1248 = vcmp.eq.f32.partialorder %v1178, %v1220
      %vm1249 = vcmp.eq.f32.partialorder %v1179, %v1220
      %vm1250 = vcmp.eq.f32.partialorder %v1180, %v1220
      %vm1251 = vcmp.eq.f32.partialorder %v1181, %v1220
      %v1252 = vsel %vm1225, inf, %v1155
      %v1253 = vsel %vm1226, inf, %v1156
      %v1254 = vsel %vm1227, inf, %v1157
      %v1255 = vsel %vm1228, inf, %v1158
      %v1256 = vsel %vm1229, inf, %v1159
      %v1257 = vsel %vm1230, inf, %v1160
      %v1258 = vsel %vm1231, inf, %v1161
      %v1259 = vsel %vm1232, inf, %v1162
      %v1260 = vsel %vm1233, inf, %v1163
      %v1261 = vsel %vm1234, inf, %v1164
      %v1262 = vsel %vm1235, inf, %v1165
      %v1263 = vsel %vm1236, inf, %v1166
      %v1264 = vsel %vm1237, inf, %v1167
      %v1265 = vsel %vm1238, inf, %v1168
      %v1266 = vsel %vm1239, inf, %v1169
      %v1267 = vsel %vm1240, inf, %v1170
      %v1268 = vsel %vm1241, inf, %v1171
      %v1269 = vsel %vm1242, inf, %v1172
      %v1270 = vsel %vm1243, inf, %v1173
      %v1271 = vsel %vm1244, inf, %v1174
      %v1272 = vsel %vm1245, inf, %v1175
      %v1273 = vsel %vm1246, inf, %v1176
      %v1274 = vsel %vm1247, inf, %v1177
      %v1275 = vsel %vm1248, inf, %v1178
      %v1276 = vsel %vm1249, inf, %v1179
      %v1277 = vsel %vm1250, inf, %v1180
      %v1278 = vsel %vm1251, inf, %v1181
      %v1279 = vmin.f32 %v1252, %v1254
      %v1280 = vmin.f32 %v1253, %v1255
      %v1281 = vmin.f32 %v1279, %v1256
      %v1282 = vmin.f32 %v1280, %v1257
      %v1283 = vmin.f32 %v1281, %v1258
      %v1284 = vmin.f32 %v1282, %v1259
      %v1285 = vmin.f32 %v1283, %v1260
      %v1286 = vmin.f32 %v1285, %v1284
      %1287 = vmin.xlane.f32.xlu0 %v1286
      %v1288 = vpop.xlane.xlu0 %1287
      %v1289 = vmin.f32 %v1261, %v1263
      %v1290 = vmin.f32 %v1262, %v1264
      %v1291 = vmin.f32 %v1289, %v1265
      %v1292 = vmin.f32 %v1290, %v1266
      %v1293 = vmin.f32 %v1291, %v1267
      %v1294 = vmin.f32 %v1292, %v1268
      %v1295 = vmin.f32 %v1293, %v1269
      %v1296 = vmin.f32 %v1295, %v1294
      %1297 = vmin.xlane.f32.xlu0 %v1296
      %v1298 = vpop.xlane.xlu0 %1297
      %v1299 = vsel %vm716, %v1270, inf
      %v1300 = vsel %vm716, %v1271, inf
      %v1301 = vsel %vm716, %v1272, inf
      %v1302 = vmin.f32 %v1299, %v1301
      %v1303 = vsel %vm716, %v1273, inf
      %v1304 = vmin.f32 %v1300, %v1303
      %v1305 = vsel %vm716, %v1274, inf
      %v1306 = vmin.f32 %v1302, %v1305
      %v1307 = vsel %vm716, %v1275, inf
      %v1308 = vmin.f32 %v1304, %v1307
      %v1309 = vsel %vm716, %v1276, inf
      %v1310 = vmin.f32 %v1306, %v1309
      %v1311 = vsel %vm716, %v1277, inf
      %v1312 = vmin.f32 %v1308, %v1311
      %v1313 = vsel %vm716, %v1278, inf
      %v1314 = vmin.f32 %v1310, %v1313
      %v1315 = vmin.f32 %v1314, %v1312
      %1316 = vmin.xlane.f32.xlu0 %v1315
      %v1317 = vpop.xlane.xlu0 %1316
      %vm1318 = vcmp.eq.s32.totalorder %v695, 6
      %v1319 = vsel %vm1318, %v1288, %v1222
      %v1320 = vsel %vm1318, %v1298, %v1223
      %v1321 = vsel %vm1318, %v1317, %v1224
      %vm1322 = vcmp.eq.f32.partialorder %v1252, %v1288
      %vm1323 = vcmp.eq.f32.partialorder %v1253, %v1288
      %vm1324 = vcmp.eq.f32.partialorder %v1254, %v1288
      %vm1325 = vcmp.eq.f32.partialorder %v1255, %v1288
      %vm1326 = vcmp.eq.f32.partialorder %v1256, %v1288
      %vm1327 = vcmp.eq.f32.partialorder %v1257, %v1288
      %vm1328 = vcmp.eq.f32.partialorder %v1258, %v1288
      %vm1329 = vcmp.eq.f32.partialorder %v1259, %v1288
      %vm1330 = vcmp.eq.f32.partialorder %v1260, %v1288
      %vm1331 = vcmp.eq.f32.partialorder %v1261, %v1298
      %vm1332 = vcmp.eq.f32.partialorder %v1262, %v1298
      %vm1333 = vcmp.eq.f32.partialorder %v1263, %v1298
      %vm1334 = vcmp.eq.f32.partialorder %v1264, %v1298
      %vm1335 = vcmp.eq.f32.partialorder %v1265, %v1298
      %vm1336 = vcmp.eq.f32.partialorder %v1266, %v1298
      %vm1337 = vcmp.eq.f32.partialorder %v1267, %v1298
      %vm1338 = vcmp.eq.f32.partialorder %v1268, %v1298
      %vm1339 = vcmp.eq.f32.partialorder %v1269, %v1298
      %vm1340 = vcmp.eq.f32.partialorder %v1270, %v1317
      %vm1341 = vcmp.eq.f32.partialorder %v1271, %v1317
      %vm1342 = vcmp.eq.f32.partialorder %v1272, %v1317
      %vm1343 = vcmp.eq.f32.partialorder %v1273, %v1317
      %vm1344 = vcmp.eq.f32.partialorder %v1274, %v1317
      %vm1345 = vcmp.eq.f32.partialorder %v1275, %v1317
      %vm1346 = vcmp.eq.f32.partialorder %v1276, %v1317
      %vm1347 = vcmp.eq.f32.partialorder %v1277, %v1317
      %vm1348 = vcmp.eq.f32.partialorder %v1278, %v1317
      %v1349 = vsel %vm1322, inf, %v1252
      %v1350 = vsel %vm1323, inf, %v1253
      %v1351 = vsel %vm1324, inf, %v1254
      %v1352 = vsel %vm1325, inf, %v1255
      %v1353 = vsel %vm1326, inf, %v1256
      %v1354 = vsel %vm1327, inf, %v1257
      %v1355 = vsel %vm1328, inf, %v1258
      %v1356 = vsel %vm1329, inf, %v1259
      %v1357 = vsel %vm1330, inf, %v1260
      %v1358 = vsel %vm1331, inf, %v1261
      %v1359 = vsel %vm1332, inf, %v1262
      %v1360 = vsel %vm1333, inf, %v1263
      %v1361 = vsel %vm1334, inf, %v1264
      %v1362 = vsel %vm1335, inf, %v1265
      %v1363 = vsel %vm1336, inf, %v1266
      %v1364 = vsel %vm1337, inf, %v1267
      %v1365 = vsel %vm1338, inf, %v1268
      %v1366 = vsel %vm1339, inf, %v1269
      %v1367 = vsel %vm1340, inf, %v1270
      %v1368 = vsel %vm1341, inf, %v1271
      %v1369 = vsel %vm1342, inf, %v1272
      %v1370 = vsel %vm1343, inf, %v1273
      %v1371 = vsel %vm1344, inf, %v1274
      %v1372 = vsel %vm1345, inf, %v1275
      %v1373 = vsel %vm1346, inf, %v1276
      %v1374 = vsel %vm1347, inf, %v1277
      %v1375 = vsel %vm1348, inf, %v1278
      %v1376 = vmin.f32 %v1349, %v1351
      %v1377 = vmin.f32 %v1350, %v1352
      %v1378 = vmin.f32 %v1376, %v1353
      %v1379 = vmin.f32 %v1377, %v1354
      %v1380 = vmin.f32 %v1378, %v1355
      %v1381 = vmin.f32 %v1379, %v1356
      %v1382 = vmin.f32 %v1380, %v1357
      %v1383 = vmin.f32 %v1382, %v1381
      %1384 = vmin.xlane.f32.xlu0 %v1383
      %v1385 = vpop.xlane.xlu0 %1384
      %v1386 = vmin.f32 %v1358, %v1360
      %v1387 = vmin.f32 %v1359, %v1361
      %v1388 = vmin.f32 %v1386, %v1362
      %v1389 = vmin.f32 %v1387, %v1363
      %v1390 = vmin.f32 %v1388, %v1364
      %v1391 = vmin.f32 %v1389, %v1365
      %v1392 = vmin.f32 %v1390, %v1366
      %v1393 = vmin.f32 %v1392, %v1391
      %1394 = vmin.xlane.f32.xlu0 %v1393
      %v1395 = vpop.xlane.xlu0 %1394
      %v1396 = vsel %vm716, %v1367, inf
      %v1397 = vsel %vm716, %v1368, inf
      %v1398 = vsel %vm716, %v1369, inf
      %v1399 = vmin.f32 %v1396, %v1398
      %v1400 = vsel %vm716, %v1370, inf
      %v1401 = vmin.f32 %v1397, %v1400
      %v1402 = vsel %vm716, %v1371, inf
      %v1403 = vmin.f32 %v1399, %v1402
      %v1404 = vsel %vm716, %v1372, inf
      %v1405 = vmin.f32 %v1401, %v1404
      %v1406 = vsel %vm716, %v1373, inf
      %v1407 = vmin.f32 %v1403, %v1406
      %v1408 = vsel %vm716, %v1374, inf
      %v1409 = vmin.f32 %v1405, %v1408
      %v1410 = vsel %vm716, %v1375, inf
      %v1411 = vmin.f32 %v1407, %v1410
      %v1412 = vmin.f32 %v1411, %v1409
      %1413 = vmin.xlane.f32.xlu0 %v1412
      %v1414 = vpop.xlane.xlu0 %1413
      %vm1415 = vcmp.eq.s32.totalorder %v695, 7
      %v1416 = vsel %vm1415, %v1385, %v1319
      %v1417 = vsel %vm1415, %v1395, %v1320
      %v1418 = vsel %vm1415, %v1414, %v1321
      %vm1419 = vcmp.eq.f32.partialorder %v1349, %v1385
      %vm1420 = vcmp.eq.f32.partialorder %v1350, %v1385
      %vm1421 = vcmp.eq.f32.partialorder %v1351, %v1385
      %vm1422 = vcmp.eq.f32.partialorder %v1352, %v1385
      %vm1423 = vcmp.eq.f32.partialorder %v1353, %v1385
      %vm1424 = vcmp.eq.f32.partialorder %v1354, %v1385
      %vm1425 = vcmp.eq.f32.partialorder %v1355, %v1385
      %vm1426 = vcmp.eq.f32.partialorder %v1356, %v1385
      %vm1427 = vcmp.eq.f32.partialorder %v1357, %v1385
      %vm1428 = vcmp.eq.f32.partialorder %v1358, %v1395
      %vm1429 = vcmp.eq.f32.partialorder %v1359, %v1395
      %vm1430 = vcmp.eq.f32.partialorder %v1360, %v1395
      %vm1431 = vcmp.eq.f32.partialorder %v1361, %v1395
      %vm1432 = vcmp.eq.f32.partialorder %v1362, %v1395
      %vm1433 = vcmp.eq.f32.partialorder %v1363, %v1395
      %vm1434 = vcmp.eq.f32.partialorder %v1364, %v1395
      %vm1435 = vcmp.eq.f32.partialorder %v1365, %v1395
      %vm1436 = vcmp.eq.f32.partialorder %v1366, %v1395
      %vm1437 = vcmp.eq.f32.partialorder %v1367, %v1414
      %vm1438 = vcmp.eq.f32.partialorder %v1368, %v1414
      %vm1439 = vcmp.eq.f32.partialorder %v1369, %v1414
      %vm1440 = vcmp.eq.f32.partialorder %v1370, %v1414
      %vm1441 = vcmp.eq.f32.partialorder %v1371, %v1414
      %vm1442 = vcmp.eq.f32.partialorder %v1372, %v1414
      %vm1443 = vcmp.eq.f32.partialorder %v1373, %v1414
      %vm1444 = vcmp.eq.f32.partialorder %v1374, %v1414
      %vm1445 = vcmp.eq.f32.partialorder %v1375, %v1414
      %v1446 = vsel %vm1419, inf, %v1349
      %v1447 = vsel %vm1420, inf, %v1350
      %v1448 = vsel %vm1421, inf, %v1351
      %v1449 = vsel %vm1422, inf, %v1352
      %v1450 = vsel %vm1423, inf, %v1353
      %v1451 = vsel %vm1424, inf, %v1354
      %v1452 = vsel %vm1425, inf, %v1355
      %v1453 = vsel %vm1426, inf, %v1356
      %v1454 = vsel %vm1427, inf, %v1357
      %v1455 = vsel %vm1428, inf, %v1358
      %v1456 = vsel %vm1429, inf, %v1359
      %v1457 = vsel %vm1430, inf, %v1360
      %v1458 = vsel %vm1431, inf, %v1361
      %v1459 = vsel %vm1432, inf, %v1362
      %v1460 = vsel %vm1433, inf, %v1363
      %v1461 = vsel %vm1434, inf, %v1364
      %v1462 = vsel %vm1435, inf, %v1365
      %v1463 = vsel %vm1436, inf, %v1366
      %v1464 = vsel %vm1437, inf, %v1367
      %v1465 = vsel %vm1438, inf, %v1368
      %v1466 = vsel %vm1439, inf, %v1369
      %v1467 = vsel %vm1440, inf, %v1370
      %v1468 = vsel %vm1441, inf, %v1371
      %v1469 = vsel %vm1442, inf, %v1372
      %v1470 = vsel %vm1443, inf, %v1373
      %v1471 = vsel %vm1444, inf, %v1374
      %v1472 = vsel %vm1445, inf, %v1375
      %v1473 = vmin.f32 %v1446, %v1448
      %v1474 = vmin.f32 %v1447, %v1449
      %v1475 = vmin.f32 %v1473, %v1450
      %v1476 = vmin.f32 %v1474, %v1451
      %v1477 = vmin.f32 %v1475, %v1452
      %v1478 = vmin.f32 %v1476, %v1453
      %v1479 = vmin.f32 %v1477, %v1454
      %v1480 = vmin.f32 %v1479, %v1478
      %1481 = vmin.xlane.f32.xlu0 %v1480
      %v1482 = vpop.xlane.xlu0 %1481
      %v1483 = vmin.f32 %v1455, %v1457
      %v1484 = vmin.f32 %v1456, %v1458
      %v1485 = vmin.f32 %v1483, %v1459
      %v1486 = vmin.f32 %v1484, %v1460
      %v1487 = vmin.f32 %v1485, %v1461
      %v1488 = vmin.f32 %v1486, %v1462
      %v1489 = vmin.f32 %v1487, %v1463
      %v1490 = vmin.f32 %v1489, %v1488
      %1491 = vmin.xlane.f32.xlu0 %v1490
      %v1492 = vpop.xlane.xlu0 %1491
      %v1493 = vsel %vm716, %v1464, inf
      %v1494 = vsel %vm716, %v1465, inf
      %v1495 = vsel %vm716, %v1466, inf
      %v1496 = vmin.f32 %v1493, %v1495
      %v1497 = vsel %vm716, %v1467, inf
      %v1498 = vmin.f32 %v1494, %v1497
      %v1499 = vsel %vm716, %v1468, inf
      %v1500 = vmin.f32 %v1496, %v1499
      %v1501 = vsel %vm716, %v1469, inf
      %v1502 = vmin.f32 %v1498, %v1501
      %v1503 = vsel %vm716, %v1470, inf
      %v1504 = vmin.f32 %v1500, %v1503
      %v1505 = vsel %vm716, %v1471, inf
      %v1506 = vmin.f32 %v1502, %v1505
      %v1507 = vsel %vm716, %v1472, inf
      %v1508 = vmin.f32 %v1504, %v1507
      %v1509 = vmin.f32 %v1508, %v1506
      %1510 = vmin.xlane.f32.xlu0 %v1509
      %v1511 = vpop.xlane.xlu0 %1510
      %vm1512 = vcmp.eq.s32.totalorder %v695, 8
      %v1513 = vsel %vm1512, %v1482, %v1416
      %v1514 = vsel %vm1512, %v1492, %v1417
      %v1515 = vsel %vm1512, %v1511, %v1418
      %vm1516 = vcmp.eq.f32.partialorder %v1446, %v1482
      %vm1517 = vcmp.eq.f32.partialorder %v1447, %v1482
      %vm1518 = vcmp.eq.f32.partialorder %v1448, %v1482
      %vm1519 = vcmp.eq.f32.partialorder %v1449, %v1482
      %vm1520 = vcmp.eq.f32.partialorder %v1450, %v1482
      %vm1521 = vcmp.eq.f32.partialorder %v1451, %v1482
      %vm1522 = vcmp.eq.f32.partialorder %v1452, %v1482
      %vm1523 = vcmp.eq.f32.partialorder %v1453, %v1482
      %vm1524 = vcmp.eq.f32.partialorder %v1454, %v1482
      %vm1525 = vcmp.eq.f32.partialorder %v1455, %v1492
      %vm1526 = vcmp.eq.f32.partialorder %v1456, %v1492
      %vm1527 = vcmp.eq.f32.partialorder %v1457, %v1492
      %vm1528 = vcmp.eq.f32.partialorder %v1458, %v1492
      %vm1529 = vcmp.eq.f32.partialorder %v1459, %v1492
      %vm1530 = vcmp.eq.f32.partialorder %v1460, %v1492
      %vm1531 = vcmp.eq.f32.partialorder %v1461, %v1492
      %vm1532 = vcmp.eq.f32.partialorder %v1462, %v1492
      %vm1533 = vcmp.eq.f32.partialorder %v1463, %v1492
      %vm1534 = vcmp.eq.f32.partialorder %v1464, %v1511
      %vm1535 = vcmp.eq.f32.partialorder %v1465, %v1511
      %vm1536 = vcmp.eq.f32.partialorder %v1466, %v1511
      %vm1537 = vcmp.eq.f32.partialorder %v1467, %v1511
      %vm1538 = vcmp.eq.f32.partialorder %v1468, %v1511
      %vm1539 = vcmp.eq.f32.partialorder %v1469, %v1511
      %vm1540 = vcmp.eq.f32.partialorder %v1470, %v1511
      %vm1541 = vcmp.eq.f32.partialorder %v1471, %v1511
      %vm1542 = vcmp.eq.f32.partialorder %v1472, %v1511
      %v1543 = vsel %vm1516, inf, %v1446
      %v1544 = vsel %vm1517, inf, %v1447
      %v1545 = vsel %vm1518, inf, %v1448
      %v1546 = vsel %vm1519, inf, %v1449
      %v1547 = vsel %vm1520, inf, %v1450
      %v1548 = vsel %vm1521, inf, %v1451
      %v1549 = vsel %vm1522, inf, %v1452
      %v1550 = vsel %vm1523, inf, %v1453
      %v1551 = vsel %vm1524, inf, %v1454
      %v1552 = vsel %vm1525, inf, %v1455
      %v1553 = vsel %vm1526, inf, %v1456
      %v1554 = vsel %vm1527, inf, %v1457
      %v1555 = vsel %vm1528, inf, %v1458
      %v1556 = vsel %vm1529, inf, %v1459
      %v1557 = vsel %vm1530, inf, %v1460
      %v1558 = vsel %vm1531, inf, %v1461
      %v1559 = vsel %vm1532, inf, %v1462
      %v1560 = vsel %vm1533, inf, %v1463
      %v1561 = vsel %vm1534, inf, %v1464
      %v1562 = vsel %vm1535, inf, %v1465
      %v1563 = vsel %vm1536, inf, %v1466
      %v1564 = vsel %vm1537, inf, %v1467
      %v1565 = vsel %vm1538, inf, %v1468
      %v1566 = vsel %vm1539, inf, %v1469
      %v1567 = vsel %vm1540, inf, %v1470
      %v1568 = vsel %vm1541, inf, %v1471
      %v1569 = vsel %vm1542, inf, %v1472
      %v1570 = vmin.f32 %v1543, %v1545
      %v1571 = vmin.f32 %v1544, %v1546
      %v1572 = vmin.f32 %v1570, %v1547
      %v1573 = vmin.f32 %v1571, %v1548
      %v1574 = vmin.f32 %v1572, %v1549
      %v1575 = vmin.f32 %v1573, %v1550
      %v1576 = vmin.f32 %v1574, %v1551
      %v1577 = vmin.f32 %v1576, %v1575
      %1578 = vmin.xlane.f32.xlu0 %v1577
      %v1579 = vpop.xlane.xlu0 %1578
      %v1580 = vmin.f32 %v1552, %v1554
      %v1581 = vmin.f32 %v1553, %v1555
      %v1582 = vmin.f32 %v1580, %v1556
      %v1583 = vmin.f32 %v1581, %v1557
      %v1584 = vmin.f32 %v1582, %v1558
      %v1585 = vmin.f32 %v1583, %v1559
      %v1586 = vmin.f32 %v1584, %v1560
      %v1587 = vmin.f32 %v1586, %v1585
      %1588 = vmin.xlane.f32.xlu0 %v1587
      %v1589 = vpop.xlane.xlu0 %1588
      %v1590 = vsel %vm716, %v1561, inf
      %v1591 = vsel %vm716, %v1562, inf
      %v1592 = vsel %vm716, %v1563, inf
      %v1593 = vmin.f32 %v1590, %v1592
      %v1594 = vsel %vm716, %v1564, inf
      %v1595 = vmin.f32 %v1591, %v1594
      %v1596 = vsel %vm716, %v1565, inf
      %v1597 = vmin.f32 %v1593, %v1596
      %v1598 = vsel %vm716, %v1566, inf
      %v1599 = vmin.f32 %v1595, %v1598
      %v1600 = vsel %vm716, %v1567, inf
      %v1601 = vmin.f32 %v1597, %v1600
      %v1602 = vsel %vm716, %v1568, inf
      %v1603 = vmin.f32 %v1599, %v1602
      %v1604 = vsel %vm716, %v1569, inf
      %v1605 = vmin.f32 %v1601, %v1604
      %v1606 = vmin.f32 %v1605, %v1603
      %1607 = vmin.xlane.f32.xlu0 %v1606
      %v1608 = vpop.xlane.xlu0 %1607
      %vm1609 = vcmp.eq.s32.totalorder %v695, 9
      %v1610 = vsel %vm1609, %v1579, %v1513
      %v1611 = vsel %vm1609, %v1589, %v1514
      %v1612 = vsel %vm1609, %v1608, %v1515
      %vm1613 = vcmp.eq.f32.partialorder %v1543, %v1579
      %vm1614 = vcmp.eq.f32.partialorder %v1544, %v1579
      %vm1615 = vcmp.eq.f32.partialorder %v1545, %v1579
      %vm1616 = vcmp.eq.f32.partialorder %v1546, %v1579
      %vm1617 = vcmp.eq.f32.partialorder %v1547, %v1579
      %vm1618 = vcmp.eq.f32.partialorder %v1548, %v1579
      %vm1619 = vcmp.eq.f32.partialorder %v1549, %v1579
      %vm1620 = vcmp.eq.f32.partialorder %v1550, %v1579
      %vm1621 = vcmp.eq.f32.partialorder %v1551, %v1579
      %vm1622 = vcmp.eq.f32.partialorder %v1552, %v1589
      %vm1623 = vcmp.eq.f32.partialorder %v1553, %v1589
      %vm1624 = vcmp.eq.f32.partialorder %v1554, %v1589
      %vm1625 = vcmp.eq.f32.partialorder %v1555, %v1589
      %vm1626 = vcmp.eq.f32.partialorder %v1556, %v1589
      %vm1627 = vcmp.eq.f32.partialorder %v1557, %v1589
      %vm1628 = vcmp.eq.f32.partialorder %v1558, %v1589
      %vm1629 = vcmp.eq.f32.partialorder %v1559, %v1589
      %vm1630 = vcmp.eq.f32.partialorder %v1560, %v1589
      %vm1631 = vcmp.eq.f32.partialorder %v1561, %v1608
      %vm1632 = vcmp.eq.f32.partialorder %v1562, %v1608
      %vm1633 = vcmp.eq.f32.partialorder %v1563, %v1608
      %vm1634 = vcmp.eq.f32.partialorder %v1564, %v1608
      %vm1635 = vcmp.eq.f32.partialorder %v1565, %v1608
      %vm1636 = vcmp.eq.f32.partialorder %v1566, %v1608
      %vm1637 = vcmp.eq.f32.partialorder %v1567, %v1608
      %vm1638 = vcmp.eq.f32.partialorder %v1568, %v1608
      %vm1639 = vcmp.eq.f32.partialorder %v1569, %v1608
      %v1640 = vsel %vm1613, inf, %v1543
      %v1641 = vsel %vm1614, inf, %v1544
      %v1642 = vsel %vm1615, inf, %v1545
      %v1643 = vsel %vm1616, inf, %v1546
      %v1644 = vsel %vm1617, inf, %v1547
      %v1645 = vsel %vm1618, inf, %v1548
      %v1646 = vsel %vm1619, inf, %v1549
      %v1647 = vsel %vm1620, inf, %v1550
      %v1648 = vsel %vm1621, inf, %v1551
      %v1649 = vsel %vm1622, inf, %v1552
      %v1650 = vsel %vm1623, inf, %v1553
      %v1651 = vsel %vm1624, inf, %v1554
      %v1652 = vsel %vm1625, inf, %v1555
      %v1653 = vsel %vm1626, inf, %v1556
      %v1654 = vsel %vm1627, inf, %v1557
      %v1655 = vsel %vm1628, inf, %v1558
      %v1656 = vsel %vm1629, inf, %v1559
      %v1657 = vsel %vm1630, inf, %v1560
      %v1658 = vsel %vm1631, inf, %v1561
      %v1659 = vsel %vm1632, inf, %v1562
      %v1660 = vsel %vm1633, inf, %v1563
      %v1661 = vsel %vm1634, inf, %v1564
      %v1662 = vsel %vm1635, inf, %v1565
      %v1663 = vsel %vm1636, inf, %v1566
      %v1664 = vsel %vm1637, inf, %v1567
      %v1665 = vsel %vm1638, inf, %v1568
      %v1666 = vsel %vm1639, inf, %v1569
      %v1667 = vmin.f32 %v1640, %v1642
      %v1668 = vmin.f32 %v1641, %v1643
      %v1669 = vmin.f32 %v1667, %v1644
      %v1670 = vmin.f32 %v1668, %v1645
      %v1671 = vmin.f32 %v1669, %v1646
      %v1672 = vmin.f32 %v1670, %v1647
      %v1673 = vmin.f32 %v1671, %v1648
      %v1674 = vmin.f32 %v1673, %v1672
      %1675 = vmin.xlane.f32.xlu0 %v1674
      %v1676 = vpop.xlane.xlu0 %1675
      %v1677 = vmin.f32 %v1649, %v1651
      %v1678 = vmin.f32 %v1650, %v1652
      %v1679 = vmin.f32 %v1677, %v1653
      %v1680 = vmin.f32 %v1678, %v1654
      %v1681 = vmin.f32 %v1679, %v1655
      %v1682 = vmin.f32 %v1680, %v1656
      %v1683 = vmin.f32 %v1681, %v1657
      %v1684 = vmin.f32 %v1683, %v1682
      %1685 = vmin.xlane.f32.xlu0 %v1684
      %v1686 = vpop.xlane.xlu0 %1685
      %v1687 = vsel %vm716, %v1658, inf
      %v1688 = vsel %vm716, %v1659, inf
      %v1689 = vsel %vm716, %v1660, inf
      %v1690 = vmin.f32 %v1687, %v1689
      %v1691 = vsel %vm716, %v1661, inf
      %v1692 = vmin.f32 %v1688, %v1691
      %v1693 = vsel %vm716, %v1662, inf
      %v1694 = vmin.f32 %v1690, %v1693
      %v1695 = vsel %vm716, %v1663, inf
      %v1696 = vmin.f32 %v1692, %v1695
      %v1697 = vsel %vm716, %v1664, inf
      %v1698 = vmin.f32 %v1694, %v1697
      %v1699 = vsel %vm716, %v1665, inf
      %v1700 = vmin.f32 %v1696, %v1699
      %v1701 = vsel %vm716, %v1666, inf
      %v1702 = vmin.f32 %v1698, %v1701
      %v1703 = vmin.f32 %v1702, %v1700
      %1704 = vmin.xlane.f32.xlu0 %v1703
      %v1705 = vpop.xlane.xlu0 %1704
      %vm1706 = vcmp.eq.s32.totalorder %v695, 10
      %v1707 = vsel %vm1706, %v1676, %v1610
      %v1708 = vsel %vm1706, %v1686, %v1611
      %v1709 = vsel %vm1706, %v1705, %v1612
      %p1710 = scmp.ne.s32.totalorder %s20, 1
      // Predicated region
      $region29: #{knn_loss.1} parent=27 // pred_check
        %p1711 = pneg %p1710
      $region30: #{knn_loss.1} parent=27 // pred_check_branch
        %1713 = sbr.rel (%p1711) target = $region32
      $region31: #{knn_loss.1} parent=27 // pred_region
        %1714 = vst [vmem:[%s224] sm:$0xff] %v1707
        %1715 = vst [vmem:[%s224 + $0x8] sm:$0xff] %v1708
        %1716 = vst [vmem:[%s224 + $0x10] sm:$0xf] %v1709
      $region32: #{knn_loss.1} parent=27 // pred_fallthru
        _
      %p1717 = scmp.eq.s32.totalorder %s20, 1
      // Predicated region
      $region33: #{knn_loss.1} parent=27 // pred_check
        %p1718 = pneg %p1717
      $region34: #{knn_loss.1} parent=27 // pred_check_branch
        %1720 = sbr.rel (%p1718) target = $region36
      $region35: #{knn_loss.1} parent=27 // pred_region
        %v1721 = vrsqrt.pop %v1707
        %v1722 = vmul.f32 %v1707, %v1721
        %vm1723 = vcmp.eq.f32.partialorder %v1707, inf
        %v1724 = vsel %vm1723, %v1707, %v1722
        %vm1725 = vcmp.eq.f32.partialorder %v1707, 0.0
        %v1726 = vand.u32 %v1707, 2147483648
        %v1727 = vsel %vm1725, %v1726, %v1724
        %v1728 = vrsqrt.pop %v1708
        %v1729 = vmul.f32 %v1708, %v1728
        %vm1730 = vcmp.eq.f32.partialorder %v1708, inf
        %v1731 = vsel %vm1730, %v1708, %v1729
        %vm1732 = vcmp.eq.f32.partialorder %v1708, 0.0
        %v1733 = vand.u32 %v1708, 2147483648
        %v1734 = vsel %vm1732, %v1733, %v1731
        %v1735 = vrsqrt.pop %v1709
        %v1736 = vmul.f32 %v1709, %v1735
        %vm1737 = vcmp.eq.f32.partialorder %v1709, inf
        %v1738 = vsel %vm1737, %v1709, %v1736
        %vm1739 = vcmp.eq.f32.partialorder %v1709, 0.0
        %v1740 = vand.u32 %v1709, 2147483648
        %v1741 = vsel %vm1739, %v1740, %v1738
        %1742 = vst [vmem:[%s224] sm:$0xff] %v1727
        %1743 = vst [vmem:[%s224 + $0x8] sm:$0xff] %v1734
        %1744 = vst [vmem:[%s224 + $0x10] sm:$0xf] %v1741
      $region36: #{knn_loss.1} parent=27 // pred_fallthru
        _
      %s1745 = smul.u32 3, %s19
      %p1746 = scmp.lt.s32.totalorder %s18, 1
      %s1747 = scalar_select %p1746, %s18, 1
      %p1748 = scmp.lt.s32.totalorder %s1745, 2
      %s1749 = scalar_select %p1748, %s1745, 2
      %s1750 = smul.addr %s1747, 3
      %s1751 = sadd.s32 %s1749, %s1750
      %s1752 = smul.addr %s1751, 8
      %s1753 = scalar_lea.vmem %s2, %s1752
      // Predicated region
      $region37: #{knn_loss.1} parent=27 // pred_check
        %p1754 = pneg %p108
      $region38: #{knn_loss.1} parent=27 // pred_check_branch
        %1756 = sbr.rel (%p1754) target = $region40
      $region39: #{knn_loss.1} parent=27 // pred_region
        %s1757 = smul.u32 3, %s19
      $region40: #{knn_loss.1} parent=27 // pred_fallthru
        _
    $region28: #{knn_loss.1} parent=5 // pred_fallthru
      _
    %p1758 = scmp.le.s32.totalorder 2, %s8
    // Predicated region
    $region41: #{knn_loss.1} parent=5 // pred_check
      %p1759 = pneg %p1758
    $region42: #{knn_loss.1} parent=5 // pred_check_branch
      %1761 = sbr.rel (%p1759) target = $region44
    $region43: #{knn_loss.1} parent=5 // pred_region
      %s1762 = ssub.s32 %s8, 2
      // Predicated region
      $region45: #{knn_loss.1} parent=43 // pred_check
        %p1763 = pneg %p114
      $region46: #{knn_loss.1} parent=43 // pred_check_branch
        %1765 = sbr.rel (%p1763) target = $region48
      $region47: #{knn_loss.1} parent=43 // pred_region
        %s1766 = smul.u32 3, %s22
        %p1767 = scmp.lt.s32.totalorder %s21, 1
        %s1768 = scalar_select %p1767, %s21, 1
        %p1769 = scmp.lt.s32.totalorder %s1766, 2
        %s1770 = scalar_select %p1769, %s1766, 2
        %s1771 = smul.addr %s1768, 3
        %s1772 = sadd.s32 %s1770, %s1771
        %s1773 = smul.addr %s1772, 8
        %s1774 = scalar_lea.vmem %s2, %s1773
      $region48: #{knn_loss.1} parent=43 // pred_fallthru
        _
    $region44: #{knn_loss.1} parent=5 // pred_fallthru
      _
  $region6: #{knn_loss.1} parent=0 // loop_footer
    %s12 = sadd.s32 1, %s8
  $region7: #{knn_loss.1} parent=0 // loop_footer_branch
    %7 = sbr.rel target = $region3
  $region8: #{knn_loss.1} parent=0 // loop_exit
    _

</llo_original>
